<compile_context>
chip_gen: v7x
topology: tpu7x:2x2x1
jax: 0.10.0
libtpu: 0.0.40
codegen_flags: <defaults>
</compile_context>

<pallas_src>
import functools
import math

import jax
import jax.numpy as jnp
import numpy as np
from jax.experimental import pallas as pl
from jax.experimental.pallas import tpu as pltpu

N_HEADS = 8
_VMEM_LIMIT = 64 * 1024 * 1024  # <= physical VMEM on v5e/v6e (128MiB) and v7x (64MiB)


def _round_up(x, m):
    return (x + m - 1) // m * m


# --------------------------- tile-size selection ---------------------------

@functools.lru_cache(maxsize=None)
def _k_tiling(K, max_tk=2048, max_extra=4):
    """Return (Kp, tk): padded K (multiple of 128) and a K-tile that divides it.

    Prefers few K grid-steps, then minimal padding (pad is applied to the
    weights once at init time, so runtime cost is only the extra zero bytes).
    """
    base = _round_up(K, 128)
    best = None
    for extra in range(max_extra + 1):
        Kp = base + extra * 128
        m = Kp // 128
        d = max(dd for dd in range(1, m + 1) if m % dd == 0 and dd * 128 <= max_tk)
        tk = d * 128
        steps = Kp // tk
        if best is None or (steps, Kp) < (best[0], best[1]):
            best = (steps, Kp, tk)
    return best[1], best[2]


@functools.lru_cache(maxsize=None)
def _n_tiling(N, max_tn=1536):
    """Return (Np, tn).  Keep N un-padded whenever possible (no wasted weight
    bytes); for large N pick a 128-multiple divisor (1280 for this model)."""
    if N <= max_tn:
        return N, N
    best = 0
    for d in range(128, max_tn + 1, 128):
        if N % d == 0:
            best = d
    if best:
        return N, best
    return _round_up(N, 128), 128  # fallback (never hit for this model)


def _m_tiling(M):
    Mp = _round_up(M, 8)
    if Mp <= 256:
        return Mp, Mp
    tm = max(t for t in (256, 128, 64, 32, 16, 8) if Mp % t == 0)
    return Mp, tm


# ------------------------------ Pallas kernels ------------------------------

def _matmul_kernel(a_ref, w_ref, b_ref, o_ref, acc_ref):
    k = pl.program_id(2)

    @pl.when(k == 0)
    def _():
        acc_ref[...] = jnp.zeros_like(acc_ref)

    acc_ref[...] += jnp.dot(a_ref[...], w_ref[...],
                            preferred_element_type=jnp.float32)

    @pl.when(k == pl.num_programs(2) - 1)
    def _():
        o_ref[...] = acc_ref[...] + b_ref[...]


_ERF_P = 0.3275911
_ERF_A = (0.254829592, -0.284496736, 1.421413741, -1.453152027, 1.061405429)


def _erf_approx(x):
    # Abramowitz & Stegun 7.1.26; max abs error ~1.5e-7 (matches torch erf-GELU
    # well below bf16 noise).  Uses only exp / div / select -> safe lowering.
    sign = jnp.where(x >= 0.0, 1.0, -1.0)
    ax = jnp.abs(x)
    t = 1.0 / (1.0 + _ERF_P * ax)
    a1, a2, a3, a4, a5 = _ERF_A
    poly = ((((a5 * t + a4) * t + a3) * t + a2) * t + a1) * t
    return sign * (1.0 - poly * jnp.exp(-ax * ax))


def _gelu_exact(x):
    return 0.5 * x * (1.0 + _erf_approx(x * 0.7071067811865476))


def _matmul_geglu_kernel(a_ref, wa_ref, wg_ref, ba_ref, bg_ref, o_ref,
                         acc_a, acc_g):
    """out = (A @ Wa + ba) * gelu(A @ Wg + bg)   (GEGLU fused into epilogue)."""
    k = pl.program_id(2)

    @pl.when(k == 0)
    def _():
        acc_a[...] = jnp.zeros_like(acc_a)
        acc_g[...] = jnp.zeros_like(acc_g)

    a = a_ref[...]
    acc_a[...] += jnp.dot(a, wa_ref[...], preferred_element_type=jnp.float32)
    acc_g[...] += jnp.dot(a, wg_ref[...], preferred_element_type=jnp.float32)

    @pl.when(k == pl.num_programs(2) - 1)
    def _():
        h = acc_a[...] + ba_ref[...]
        g = acc_g[...] + bg_ref[...]
        o_ref[...] = h * _gelu_exact(g)


def _layernorm_kernel(x_ref, g_ref, b_ref, o_ref):
    x = x_ref[...]
    mean = jnp.mean(x, axis=-1, keepdims=True)
    d = x - mean
    var = jnp.mean(d * d, axis=-1, keepdims=True)
    o_ref[...] = d * jax.lax.rsqrt(var + 1e-5) * g_ref[...] + b_ref[...]


def _groupnorm_kernel(x_ref, g_ref, b_ref, o_ref, *, groups, silu):
    """GroupNorm on an NHWC slab (S, C) for one batch element.

    Per-group reduce / broadcast along the channel (lane) axis is done with
    tiny 0/1 selection-matrix matmuls (iota-built in VMEM) so gamma/beta stay
    (1, C) and nothing is pre-broadcast through HBM."""
    x = x_ref[0]                                      # (S, C) f32
    S, C = x.shape
    cg = C // groups
    # (C, G) channel->group and (G, C) group->channel selection matrices.
    sel = (jax.lax.broadcasted_iota(jnp.int32, (C, groups), 0) // cg ==
           jax.lax.broadcasted_iota(jnp.int32, (C, groups), 1)).astype(jnp.float32)
    sel_t = (jax.lax.broadcasted_iota(jnp.int32, (groups, C), 1) // cg ==
             jax.lax.broadcasted_iota(jnp.int32, (groups, C), 0)).astype(jnp.float32)

    inv_n = 1.0 / float(S * cg)
    s1 = jnp.sum(x, axis=0, keepdims=True)            # (1, C)
    mean_g = jnp.dot(s1, sel, preferred_element_type=jnp.float32) * inv_n
    mean_c = jnp.dot(mean_g, sel_t, preferred_element_type=jnp.float32)
    d = x - mean_c
    s2 = jnp.sum(d * d, axis=0, keepdims=True)        # (1, C)
    var_g = jnp.dot(s2, sel, preferred_element_type=jnp.float32) * inv_n
    rstd_c = jnp.dot(jax.lax.rsqrt(var_g + 1e-5), sel_t,
                     preferred_element_type=jnp.float32)
    y = d * rstd_c * g_ref[...] + b_ref[...]
    if silu:
        y = y * (1.0 / (1.0 + jnp.exp(-y)))           # fused SiLU
    o_ref[0] = y


def _attention_kernel(q_ref, k_ref, v_ref, o_ref, *, scale):
    q = q_ref[0] * scale                              # (H, S, dh), scale folded into q
    k = k_ref[0]
    v = v_ref[0]
    s = jnp.einsum('hqd,hkd->hqk', q, k, preferred_element_type=jnp.float32)
    m = jnp.max(s, axis=-1, keepdims=True)
    e = jnp.exp(s - m)
    p = e * pl.reciprocal(jnp.sum(e, axis=-1, keepdims=True), approx=True)
    o_ref[0] = jnp.einsum('hqk,hkd->hqd', p.astype(v.dtype), v,
                          preferred_element_type=jnp.float32)


# ------------------------------- op wrappers -------------------------------

def matmul_bias(a, w, b):
    """a: (M, K) float; w: (Kp, Np) bf16 (pre-padded at init); b: (N,) f32."""
    M, K = a.shape
    Kp_w, Np_w = w.shape
    Kp, tk = _k_tiling(K)
    assert Kp == Kp_w, (K, Kp, Kp_w)
    N = b.shape[0]
    Np, tn = _n_tiling(N)
    assert Np == Np_w, (N, Np, Np_w)
    Mp, tm = _m_tiling(M)

    a_p = a.astype(jnp.bfloat16)
    if Mp != M or Kp != K:
        a_p = jnp.pad(a_p, ((0, Mp - M), (0, Kp - K)))
    b_p = b.reshape(1, N).astype(jnp.float32)
    if Np != N:
        b_p = jnp.pad(b_p, ((0, 0), (0, Np - N)))

    out = pl.pallas_call(
        _matmul_kernel,
        out_shape=jax.ShapeDtypeStruct((Mp, Np), jnp.float32),
        grid_spec=pltpu.PrefetchScalarGridSpec(
            num_scalar_prefetch=0,
            grid=(Mp // tm, Np // tn, Kp // tk),
            in_specs=[
                pl.BlockSpec((tm, tk), lambda i, j, k: (i, k)),
                pl.BlockSpec((tk, tn), lambda i, j, k: (k, j)),
                pl.BlockSpec((1, tn), lambda i, j, k: (0, j)),
            ],
            out_specs=pl.BlockSpec((tm, tn), lambda i, j, k: (i, j)),
            scratch_shapes=[pltpu.VMEM((tm, tn), jnp.float32)],
        ),
        compiler_params=pltpu.CompilerParams(
            dimension_semantics=("parallel", "parallel", "arbitrary"),
            vmem_limit_bytes=_VMEM_LIMIT),
    )(a_p, w, b_p)
    if Mp != M or Np != N:
        out = out[:M, :N]
    return out


def matmul_geglu(a, w, b, n_half):
    """Fused lin1 + GEGLU: (a@w[:, :n_half]+b[:n_half]) * gelu(a@w[:, n_half:]+b[n_half:])."""
    M, K = a.shape
    Kp_w, Nw = w.shape
    Kp, tk = _k_tiling(K)
    assert Kp == Kp_w and Nw == 2 * n_half
    Np, tn = _n_tiling(n_half)
    assert Np == n_half
    Mp, tm = _m_tiling(M)

    a_p = a.astype(jnp.bfloat16)
    if Mp != M or Kp != K:
        a_p = jnp.pad(a_p, ((0, Mp - M), (0, Kp - K)))
    b_p = b.reshape(1, 2 * n_half).astype(jnp.float32)
    off = n_half // tn

    out = pl.pallas_call(
        _matmul_geglu_kernel,
        out_shape=jax.ShapeDtypeStruct((Mp, n_half), jnp.float32),
        grid_spec=pltpu.PrefetchScalarGridSpec(
            num_scalar_prefetch=0,
            grid=(Mp // tm, n_half // tn, Kp // tk),
            in_specs=[
                pl.BlockSpec((tm, tk), lambda i, j, k: (i, k)),
                pl.BlockSpec((tk, tn), lambda i, j, k: (k, j)),
                pl.BlockSpec((tk, tn), lambda i, j, k: (k, j + off)),
                pl.BlockSpec((1, tn), lambda i, j, k: (0, j)),
                pl.BlockSpec((1, tn), lambda i, j, k: (0, j + off)),
            ],
            out_specs=pl.BlockSpec((tm, tn), lambda i, j, k: (i, j)),
            scratch_shapes=[pltpu.VMEM((tm, tn), jnp.float32),
                            pltpu.VMEM((tm, tn), jnp.float32)],
        ),
        compiler_params=pltpu.CompilerParams(
            dimension_semantics=("parallel", "parallel", "arbitrary"),
            vmem_limit_bytes=_VMEM_LIMIT),
    )(a_p, w, w, b_p, b_p)
    if Mp != M:
        out = out[:M]
    return out


def layer_norm(x2d, p):
    R, C = x2d.shape
    tr = R if R <= 256 else max(t for t in (256, 128, 64, 32, 16, 8) if R % t == 0)
    return pl.pallas_call(
        _layernorm_kernel,
        out_shape=jax.ShapeDtypeStruct((R, C), jnp.float32),
        grid_spec=pltpu.PrefetchScalarGridSpec(
            num_scalar_prefetch=0,
            grid=(R // tr,),
            in_specs=[pl.BlockSpec((tr, C), lambda i: (i, 0)),
                      pl.BlockSpec((1, C), lambda i: (0, 0)),
                      pl.BlockSpec((1, C), lambda i: (0, 0))],
            out_specs=pl.BlockSpec((tr, C), lambda i: (i, 0)),
        ),
        compiler_params=pltpu.CompilerParams(
            dimension_semantics=("parallel",),
            vmem_limit_bytes=_VMEM_LIMIT),
    )(x2d, p["g"].reshape(1, C), p["b"].reshape(1, C))


def group_norm(x, p, silu=False):
    """x: NHWC fp32."""
    n, h, w, c = x.shape
    S = h * w
    xr = x.reshape(n, S, c)
    kern = functools.partial(_groupnorm_kernel, groups=32, silu=silu)
    y = pl.pallas_call(
        kern,
        out_shape=jax.ShapeDtypeStruct((n, S, c), jnp.float32),
        grid_spec=pltpu.PrefetchScalarGridSpec(
            num_scalar_prefetch=0,
            grid=(n,),
            in_specs=[pl.BlockSpec((1, S, c), lambda i: (i, 0, 0)),
                      pl.BlockSpec((1, c), lambda i: (0, 0)),
                      pl.BlockSpec((1, c), lambda i: (0, 0))],
            out_specs=pl.BlockSpec((1, S, c), lambda i: (i, 0, 0)),
        ),
        compiler_params=pltpu.CompilerParams(
            dimension_semantics=("parallel",),
            vmem_limit_bytes=_VMEM_LIMIT),
    )(xr, p["g"].reshape(1, c), p["b"].reshape(1, c))
    return y.reshape(n, h, w, c)


def conv2d(x, p, k, stride=1):
    """x: NHWC; p['w']: (Kp, cout) bf16 flattened (kh, kw, cin); p['b']: (cout,)."""
    n, h, wd, cin = x.shape
    w, b = p["w"], p["b"]
    cout = b.shape[0]
    if k == 1:
        out = matmul_bias(x.reshape(n * h * wd, cin), w, b)
        return out.reshape(n, h, wd, cout)
    pad = 1
    xp = jnp.pad(x.astype(jnp.bfloat16), ((0, 0), (pad, pad), (pad, pad), (0, 0)))
    ho = (h + 2 * pad - k) // stride + 1
    wo = (wd + 2 * pad - k) // stride + 1
    # TODO(synk): im2col still materializes a (M, 9*cin) bf16 patch matrix; a
    # further win is folding the 9 (kh,kw) offsets into the matmul grid itself.
    cols = []
    for i in range(k):
        for j in range(k):
            cols.append(xp[:, i:i + (ho - 1) * stride + 1:stride,
                              j:j + (wo - 1) * stride + 1:stride, :])
    pm = jnp.concatenate(cols, axis=-1).reshape(n * ho * wo, k * k * cin)
    out = matmul_bias(pm, w, b)
    return out.reshape(n, ho, wo, cout)


def _mha(xq2d, xkv2d, n, Sq, Skv, pq, pk, pv, po):
    c = po["w"].shape[1]
    H = N_HEADS
    dh = c // H
    q = matmul_bias(xq2d, pq["w"], pq["b"])
    k = matmul_bias(xkv2d, pk["w"], pk["b"])
    v = matmul_bias(xkv2d, pv["w"], pv["b"])
    q = q.reshape(n, Sq, H, dh).transpose(0, 2, 1, 3).astype(jnp.bfloat16)
    k = k.reshape(n, Skv, H, dh).transpose(0, 2, 1, 3).astype(jnp.bfloat16)
    v = v.reshape(n, Skv, H, dh).transpose(0, 2, 1, 3).astype(jnp.bfloat16)
    scale = 1.0 / math.sqrt(dh)

    o = pl.pallas_call(
        functools.partial(_attention_kernel, scale=scale),
        out_shape=jax.ShapeDtypeStruct((n, H, Sq, dh), jnp.float32),
        grid_spec=pltpu.PrefetchScalarGridSpec(
            num_scalar_prefetch=0,
            grid=(n,),
            in_specs=[pl.BlockSpec((1, H, Sq, dh), lambda i: (i, 0, 0, 0)),
                      pl.BlockSpec((1, H, Skv, dh), lambda i: (i, 0, 0, 0)),
                      pl.BlockSpec((1, H, Skv, dh), lambda i: (i, 0, 0, 0))],
            out_specs=pl.BlockSpec((1, H, Sq, dh), lambda i: (i, 0, 0, 0)),
        ),
        compiler_params=pltpu.CompilerParams(
            dimension_semantics=("parallel",),
            vmem_limit_bytes=_VMEM_LIMIT),
    )(q, k, v)
    o = o.transpose(0, 2, 1, 3).reshape(n * Sq, c)
    return matmul_bias(o, po["w"], po["b"])


# --------------------------------- blocks ----------------------------------

def residual_block(p, x, time):
    residue = x
    y = group_norm(x, p["gn1"], silu=True)
    y = conv2d(y, p["conv1"], k=3)
    t = matmul_bias(jax.nn.silu(time), p["lin"]["w"], p["lin"]["b"])
    y = y + t[:, None, None, :]
    m = group_norm(y, p["gn2"], silu=True)
    m = conv2d(m, p["conv2"], k=3)
    if "skip" in p:
        residue = conv2d(residue, p["skip"], k=1)
    return m + residue


def attention_block(p, x, context):
    n, h, w, c = x.shape
    long_res = x
    y = group_norm(x, p["gn"], silu=False)
    y = conv2d(y, p["conv_in"], k=1)
    S = h * w
    xs = y.reshape(n, S, c)
    nc, sc, dcross = context.shape
    ctx2d = context.reshape(nc * sc, dcross)

    x2d = xs.reshape(n * S, c)
    h1 = layer_norm(x2d, p["ln1"])
    xs = xs + _mha(h1, h1, n, S, S,
                   p["a1_q"], p["a1_k"], p["a1_v"], p["a1_o"]).reshape(n, S, c)

    x2d = xs.reshape(n * S, c)
    h2 = layer_norm(x2d, p["ln2"])
    xs = xs + _mha(h2, ctx2d, n, S, sc,
                   p["a2_q"], p["a2_k"], p["a2_v"], p["a2_o"]).reshape(n, S, c)

    # ffn(layer_norm_3(x)): the residue inside ffn is the *normed* input,
    # exactly as in the reference PyTorch code.
    x2d = xs.reshape(n * S, c)
    h3 = layer_norm(x2d, p["ln3"])
    a = matmul_geglu(h3, p["lin1"]["w"], p["lin1"]["b"], n_half=4 * c)
    xs = (h3 + matmul_bias(a, p["lin2"]["w"], p["lin2"]["b"])).reshape(n, S, c)

    y = xs.reshape(n, h, w, c)
    y = conv2d(y, p["conv_out"], k=1)
    return y + long_res


def upsample(p, x):
    x = jnp.repeat(jnp.repeat(x, 2, axis=1), 2, axis=2)   # nearest, scale 2 (NHWC)
    return conv2d(x, p, k=3, stride=1)


# Per-shape jitted entry points: all glue (pads, im2col concat, casts, residual
# adds) fuses inside each block while the compile count stays bounded.
residual_block_j = jax.jit(residual_block)
attention_block_j = jax.jit(attention_block)
conv2d_j = jax.jit(conv2d, static_argnames=("k", "stride"))
upsample_j = jax.jit(upsample)


def apply_layer(layer, x, time, context):
    for kind, p in layer:
        if kind == "res":
            x = residual_block_j(p, x, time)
        elif kind == "attn":
            x = attention_block_j(p, x, context)
        elif kind == "conv1":
            x = conv2d_j(x, p, k=3, stride=1)
        elif kind == "conv2":
            x = conv2d_j(x, p, k=3, stride=2)
        elif kind == "up":
            x = upsample_j(p, x)
        else:
            raise ValueError(kind)
    return x


def unet_forward(params, x, time, context):
    x = jnp.transpose(x, (0, 2, 3, 1))                 # NCHW -> NHWC (internal)
    skips = []
    for layer in params["encoder"]:
        x = apply_layer(layer, x, time, context)
        skips.append(x)
    x = apply_layer(params["bottleneck"], skips[-1], time, context)
    for layer in params["decoder"]:
        x = jnp.concatenate([x, skips.pop()], axis=-1)  # channel concat in NHWC
        x = apply_layer(layer, x, time, context)
    return jnp.transpose(x, (0, 3, 1, 2))               # back to NCHW


# ------------------------------ parameter init ------------------------------

class ParamFactory:
    """Creates weights already padded (K to the matmul tiling) and cast to bf16,
    so no per-call weight padding/copy happens at runtime."""

    def __init__(self, seed):
        self._key = jax.random.PRNGKey(seed)

    def _next(self):
        self._key, k = jax.random.split(self._key)
        return k

    def _weight(self, fin, fout, std):
        w = jax.random.normal(self._next(), (fin, fout), jnp.float32) * std
        Kp, _ = _k_tiling(fin)
        Np, _ = _n_tiling(fout)
        if Kp != fin or Np != fout:
            w = jnp.pad(w, ((0, Kp - fin), (0, Np - fout)))
        return w.astype(jnp.bfloat16)

    def linear(self, fin, fout, bias=True):
        std = 1.0 / np.sqrt(fin)
        # bias=False (q/k/v) is represented by an exact zero bias.
        return {"w": self._weight(fin, fout, std),
                "b": jnp.zeros((fout,), jnp.float32)}

    def conv(self, cin, cout, k):
        fin = cin * k * k
        std = 1.0 / np.sqrt(fin)
        return {"w": self._weight(fin, cout, std),
                "b": jnp.zeros((cout,), jnp.float32)}

    def norm(self, c):
        return {"g": jnp.ones((c,), jnp.float32),
                "b": jnp.zeros((c,), jnp.float32)}


def init_res(pf, cin, cout, tdim=1280):
    p = {"gn1": pf.norm(cin), "conv1": pf.conv(cin, cout, 3),
         "lin": pf.linear(tdim, cout),
         "gn2": pf.norm(cout), "conv2": pf.conv(cout, cout, 3)}
    if cin != cout:
        p["skip"] = pf.conv(cin, cout, 1)
    return p


def init_attn(pf, n_heads, n_embed, hidden=768):
    c = n_heads * n_embed
    return {"gn": pf.norm(c),
            "conv_in": pf.conv(c, c, 1), "conv_out": pf.conv(c, c, 1),
            "ln1": pf.norm(c), "ln2": pf.norm(c), "ln3": pf.norm(c),
            "a1_q": pf.linear(c, c, False), "a1_k": pf.linear(c, c, False),
            "a1_v": pf.linear(c, c, False), "a1_o": pf.linear(c, c, True),
            "a2_q": pf.linear(c, c, False), "a2_k": pf.linear(hidden, c, False),
            "a2_v": pf.linear(hidden, c, False), "a2_o": pf.linear(c, c, True),
            "lin1": pf.linear(c, 8 * c, True), "lin2": pf.linear(4 * c, c, True)}


def init_unet(seed=1):
    pf = ParamFactory(seed)
    enc = [
        [("conv1", pf.conv(4, 320, 3))],
        [("res", init_res(pf, 320, 320)), ("attn", init_attn(pf, 8, 40))],
        [("res", init_res(pf, 320, 320)), ("attn", init_attn(pf, 8, 40))],
        [("conv2", pf.conv(320, 320, 3))],
        [("res", init_res(pf, 320, 640)), ("attn", init_attn(pf, 8, 80))],
        [("res", init_res(pf, 640, 640)), ("attn", init_attn(pf, 8, 80))],
        [("conv2", pf.conv(640, 640, 3))],
        [("res", init_res(pf, 640, 1280)), ("attn", init_attn(pf, 8, 160))],
        [("res", init_res(pf, 1280, 1280)), ("attn", init_attn(pf, 8, 160))],
        [("conv2", pf.conv(1280, 1280, 3))],
        [("res", init_res(pf, 1280, 1280))],
        [("res", init_res(pf, 1280, 1280))],
    ]
    bottleneck = [("res", init_res(pf, 1280, 1280)),
                  ("attn", init_attn(pf, 8, 160)),
                  ("res", init_res(pf, 1280, 1280))]
    dec = [
        [("res", init_res(pf, 2560, 1280))],
        [("res", init_res(pf, 2560, 1280))],
        [("res", init_res(pf, 2560, 1280)), ("up", pf.conv(1280, 1280, 3))],
        [("res", init_res(pf, 2560, 1280)), ("attn", init_attn(pf, 8, 160))],
        [("res", init_res(pf, 2560, 1280)), ("attn", init_attn(pf, 8, 160))],
        [("res", init_res(pf, 1920, 1280)), ("attn", init_attn(pf, 8, 160)),
         ("up", pf.conv(1280, 1280, 3))],
        [("res", init_res(pf, 1920, 640)), ("attn", init_attn(pf, 8, 80))],
        [("res", init_res(pf, 1280, 640)), ("attn", init_attn(pf, 8, 80))],
        [("res", init_res(pf, 960, 640)), ("attn", init_attn(pf, 8, 80)),
         ("up", pf.conv(640, 640, 3))],
        [("res", init_res(pf, 960, 320)), ("attn", init_attn(pf, 8, 40))],
        [("res", init_res(pf, 640, 320)), ("attn", init_attn(pf, 8, 40))],
        [("res", init_res(pf, 640, 320)), ("attn", init_attn(pf, 8, 40))],
    ]
    return {"encoder": enc, "bottleneck": bottleneck, "decoder": dec}


# ----------------------------------- main -----------------------------------

if __name__ == "__main__":
    key = jax.random.PRNGKey(0)
    kx, kt, kc = jax.random.split(key, 3)
    # Small inputs consistent with the module: NCHW latent, 1280-d time embed,
    # (N, S_ctx, 768) text context.  H=W=16 keeps the spatial pyramid valid.
    x = jax.random.normal(kx, (2, 4, 16, 16), jnp.float32)
    time = jax.random.normal(kt, (2, 1280), jnp.float32)
    context = jax.random.normal(kc, (2, 8, 768), jnp.float32)

    params = init_unet(seed=1)
    out = unet_forward(params, x, time, context)
    out = jax.block_until_ready(out)

    assert out.shape == (2, 320, 16, 16), out.shape
    assert bool(jnp.all(jnp.isfinite(out)))
    print("KERNEL_OK")
</pallas_src>

<mosaic_0001>
module attributes {stable_mosaic.version = 11 : i64} {
  func.func @_matmul_kernel(%arg0: i32, %arg1: i32, %arg2: i32, %arg3: memref<256x128xbf16, #tpu.memory_space<vmem>>, %arg4: memref<128x320xbf16, #tpu.memory_space<vmem>>, %arg5: memref<1x320xf32, #tpu.memory_space<vmem>>, %arg6: memref<256x320xf32, #tpu.memory_space<vmem>>, %arg7: memref<256x320xf32, #tpu.memory_space<vmem>>) attributes {dimension_semantics = [#tpu.dimension_semantics<parallel>, #tpu.dimension_semantics<parallel>, #tpu.dimension_semantics<arbitrary>], iteration_bounds = array<i64: 2, 1, 1>, scalar_prefetch = 0 : i64, scratch_operands = 1 : i64, tpu.core_type = #tpu.core_type<tc>, window_params = [{transform_indices = @transform_0, window_bounds = array<i64: 256, 128>}, {transform_indices = @transform_1, window_bounds = array<i64: 128, 320>}, {transform_indices = @transform_2, window_bounds = array<i64: 1, 320>}, {transform_indices = @transform_3, window_bounds = array<i64: 256, 320>}]} {
    %c0_i32 = arith.constant 0 : i32
    %0 = arith.cmpi eq, %arg2, %c0_i32 : i32
    %1 = arith.extui %0 : i1 to i32
    %c0_i32_0 = arith.constant 0 : i32
    %2 = arith.cmpi ne, %1, %c0_i32_0 : i32
    scf.if %2 {
      %cst_10 = arith.constant 0.000000e+00 : f32
      %12 = vector.broadcast %cst_10 : f32 to vector<256x320xf32>
      %c0_11 = arith.constant 0 : index
      %c0_12 = arith.constant 0 : index
      %13 = vector.load %arg7[%c0_11, %c0_12] : memref<256x320xf32, #tpu.memory_space<vmem>>, vector<256x320xf32>
      tpu.vector_store %arg7[%c0_11, %c0_12], %12 {strides = array<i32>} : memref<256x320xf32, #tpu.memory_space<vmem>>, vector<256x320xf32>,
    } else {
    }
    %c0 = arith.constant 0 : index
    %c0_1 = arith.constant 0 : index
    %3 = vector.load %arg7[%c0, %c0_1] : memref<256x320xf32, #tpu.memory_space<vmem>>, vector<256x320xf32>
    %c0_2 = arith.constant 0 : index
    %c0_3 = arith.constant 0 : index
    %4 = vector.load %arg3[%c0_2, %c0_3] : memref<256x128xbf16, #tpu.memory_space<vmem>>, vector<256x128xbf16>
    %c0_4 = arith.constant 0 : index
    %c0_5 = arith.constant 0 : index
    %5 = vector.load %arg4[%c0_4, %c0_5] : memref<128x320xbf16, #tpu.memory_space<vmem>>, vector<128x320xbf16>
    %cst = arith.constant dense<0.000000e+00> : vector<256x320xf32>
    %6 = tpu.matmul %4, %5, %cst {dimension_numbers = #tpu.dot_dimension_numbers<[1], [0], [0], [1], [0, 0, 1, 1], [], []>} : vector<256x128xbf16>, vector<128x320xbf16>, vector<256x320xf32> -> vector<256x320xf32>
    %7 = arith.addf %3, %6 : vector<256x320xf32>
    %c0_6 = arith.constant 0 : index
    %c0_7 = arith.constant 0 : index
    %8 = vector.load %arg7[%c0_6, %c0_7] : memref<256x320xf32, #tpu.memory_space<vmem>>, vector<256x320xf32>
    tpu.vector_store %arg7[%c0_6, %c0_7], %7 {strides = array<i32>} : memref<256x320xf32, #tpu.memory_space<vmem>>, vector<256x320xf32>,
    %c0_i32_8 = arith.constant 0 : i32
    %9 = arith.cmpi eq, %arg2, %c0_i32_8 : i32
    %10 = arith.extui %9 : i1 to i32
    %c0_i32_9 = arith.constant 0 : i32
    %11 = arith.cmpi ne, %10, %c0_i32_9 : i32
    scf.if %11 {
      %c0_10 = arith.constant 0 : index
      %c0_11 = arith.constant 0 : index
      %12 = vector.load %arg7[%c0_10, %c0_11] : memref<256x320xf32, #tpu.memory_space<vmem>>, vector<256x320xf32>
      %c0_12 = arith.constant 0 : index
      %c0_13 = arith.constant 0 : index
      %13 = vector.load %arg5[%c0_12, %c0_13] : memref<1x320xf32, #tpu.memory_space<vmem>>, vector<1x320xf32>
      %14 = vector.broadcast %13 : vector<1x320xf32> to vector<256x320xf32>
      %15 = arith.addf %12, %14 : vector<256x320xf32>
      %c0_14 = arith.constant 0 : index
      %c0_15 = arith.constant 0 : index
      %16 = vector.load %arg6[%c0_14, %c0_15] : memref<256x320xf32, #tpu.memory_space<vmem>>, vector<256x320xf32>
      tpu.vector_store %arg6[%c0_14, %c0_15], %15 {strides = array<i32>} : memref<256x320xf32, #tpu.memory_space<vmem>>, vector<256x320xf32>,
    } else {
    }
    return
  }
  func.func @transform_0(%arg0: i32, %arg1: i32, %arg2: i32) -> (i32, i32) {
    %c0_i32 = arith.constant 0 : i32
    return %arg0, %arg2 : i32, i32
  }
  func.func @transform_1(%arg0: i32, %arg1: i32, %arg2: i32) -> (i32, i32) {
    %c0_i32 = arith.constant 0 : i32
    return %arg2, %arg1 : i32, i32
  }
  func.func @transform_2(%arg0: i32, %arg1: i32, %arg2: i32) -> (i32, i32) {
    %c0_i32 = arith.constant 0 : i32
    %c0_i32_0 = arith.constant 0 : i32
    return %c0_i32, %arg1 : i32, i32
  }
  func.func @transform_3(%arg0: i32, %arg1: i32, %arg2: i32) -> (i32, i32) {
    %c0_i32 = arith.constant 0 : i32
    return %arg0, %arg1 : i32, i32
  }
}

</mosaic_0001>

<llo_original>
// kernel: conv2d.1
$region0: #{conv2d.1}
  #allocation0 [shape = 'u32[]', space=smem, size = 0x4, offset = 0x4, fixed_abs, tag = 'smem constant byte address 0x4 - core index']
  #allocation1 [shape = 'u32[144,128]{1,0:T(1,128)}', space=vmem, size = 0x12000, scoped, tag = 'internal scratch']
  #allocation2 [shape = 'f32[256,320]{1,0:T(8,128)}', space=vmem, size = 0x60000, scoped, tag = 'scratch operand']
  %s0 = inlined_call_operand.hbm [shape: bf16[512,128], index: 0, kind: input, shape index: {}]
  %s1 = inlined_call_operand.hbm [shape: bf16[128,320], index: 1, kind: input, shape index: {}]
  %s2 = inlined_call_operand.hbm [shape: f32[1,320], index: 2, kind: input, shape index: {}]
  %s3 = inlined_call_operand.hbm [shape: f32[512,320], index: 3, kind: output, shape index: {}]
  %s4 = sld [smem:[#allocation0]]
  $region65: #{conv2d.1} parent=0
    _
  %s6 = ssub.s32 1, %s4
  %s7 = scalar_select 0, %s6, %s4
  $region1: #{conv2d.1} parent=0
    #allocation3 [shape = 'u8[131072]{0}', space=vmem, size = 0x20000, scoped, tag = 'input window, operand 0']
    #allocation4 [shape = 's32[2]{0}', space=sflag, size = 0x8, scoped, tag = 'scoped memory for conv2d.1']
    #allocation5 [shape = 's32[2]{0}', space=sflag, size = 0x8, scoped, tag = 'scoped memory for conv2d.1']
    #allocation6 [shape = 'u8[98304]{0}', space=vmem, size = 0x18000, scoped, tag = 'input window, operand 1, single buffered']
    #allocation7 [shape = 's32[1]{0}', space=sflag, size = 0x4, scoped, tag = 'scoped memory for conv2d.1']
    #allocation8 [shape = 'u8[1536]{0}', space=vmem, size = 0x800, scoped, tag = 'input window, operand 2, single buffered']
    #allocation9 [shape = 'u8[786432]{0}', space=vmem, size = 0xc0000, scoped, tag = 'output window, operand 0']
    %8 = vsyncpa [#allocation4], 0
    %s9 = scalar_lea.sflag [#allocation4], 1
    %10 = vsyncpa %s9, 0
    %11 = vsyncpa [#allocation7], 0
    %12 = vsyncpa [#allocation5], 0
    %s13 = scalar_lea.sflag [#allocation5], 1
    %14 = vsyncpa %s13, 0
    loop: start=0, step=1, limit=4
    $region2: #{conv2d.1} parent=1 // loop_pre_header
      _
    $region3: #{conv2d.1} parent=1 // loop_header
      %s16 = sphi 0, %s20
      %p17 = scmp.ge.s32.totalorder %s16, 4
      %s23 = sphi 0, %s42
      %s24 = sphi 0, %s38
      %s25 = sphi 0, %s34
      %s26 = sphi 0, %s23
      %s27 = sphi 0, %s24
      %s28 = sphi 0, %s25
      %s29 = sphi 0, %s26
      %s30 = sphi 0, %s27
      %s31 = sphi 0, %s28
      %s47 = sphi 0, %s49
      %s50 = sphi 0, %s47
      %s51 = sphi 0, %s50
      %s67 = sphi 0, %s51
      %s75 = sphi 0, %s77
      %s78 = sphi 0, %s75
      %s79 = sphi 0, %s78
      %s95 = sphi 0, %s79
      %s101 = sphi 0, %s103
      %s104 = sphi 0, %s101
      %s105 = sphi 0, %s104
      %s121 = sphi 0, %s105
      %s129 = sphi 0, %s131
      %s132 = sphi 0, %s129
      %s133 = sphi 0, %s132
      %s149 = sphi 0, %s133
    $region4: #{conv2d.1} parent=1 // loop_header_branch
      %19 = sbr.rel (%p17) target = $region8
    $region5: #{conv2d.1} parent=1 // loop_body
      %s21 = ssub.s32 %s16, 1
      %s22 = ssub.s32 %s16, 2
      %s32 = sadd.s32 1, %s25
      %p33 = scmp.ge.s32.totalorder %s32, 1
      %s34 = scalar_select %p33, 0, %s32
      %s35 = sadd.s32 1, %s24
      %s36 = scalar_select %p33, %s35, %s24
      %p37 = scmp.ge.s32.totalorder %s36, 1
      %s38 = scalar_select %p37, 0, %s36
      %s39 = sadd.s32 1, %s23
      %s40 = scalar_select %p37, %s39, %s23
      %p41 = scmp.ge.s32.totalorder %s40, 2
      %s42 = scalar_select %p41, 0, %s40
      %s43 = ssub.s32 %s23, %s42
      %s44 = ssub.s32 %s25, %s34
      %s45 = sor.u32 %s43, %s44
      %p46 = scmp.eq.s32.totalorder %s45, 0
      %s48 = sadd.s32 %s47, 1
      %s49 = scalar_select %p46, %s47, %s48
      %p52 = pneg %p46
      %p53 = scmp.eq.s32.totalorder %s16, 1
      %p54 = por %p52, %p53
      %p55 = scmp.ne.s32.totalorder %s47, %s50
      %p56 = scmp.eq.s32.totalorder %s16, 0
      %p57 = por %p55, %p56
      %p58 = scmp.ne.s32.totalorder %s47, %s50
      %p59 = scmp.eq.s32.totalorder %s21, 1
      %p60 = por %p58, %p59
      %p61 = scmp.ne.s32.totalorder %s50, %s51
      %p62 = scmp.eq.s32.totalorder %s21, 0
      %p63 = por %p61, %p62
      %p64 = scmp.ne.s32.totalorder %s50, %s51
      %p65 = scmp.eq.s32.totalorder %s22, 1
      %p66 = por %p64, %p65
      %p68 = scmp.ne.s32.totalorder %s51, %s67
      %p69 = scmp.eq.s32.totalorder %s22, 0
      %p70 = por %p68, %p69
      %s71 = ssub.s32 %s25, %s34
      %s72 = ssub.s32 %s24, %s38
      %s73 = sor.u32 %s71, %s72
      %p74 = scmp.eq.s32.totalorder %s73, 0
      %s76 = sadd.s32 %s75, 1
      %s77 = scalar_select %p74, %s75, %s76
      %p80 = pneg %p74
      %p81 = scmp.eq.s32.totalorder %s16, 1
      %p82 = por %p80, %p81
      %p83 = scmp.ne.s32.totalorder %s75, %s78
      %p84 = scmp.eq.s32.totalorder %s16, 0
      %p85 = por %p83, %p84
      %p86 = scmp.ne.s32.totalorder %s75, %s78
      %p87 = scmp.eq.s32.totalorder %s21, 1
      %p88 = por %p86, %p87
      %p89 = scmp.ne.s32.totalorder %s78, %s79
      %p90 = scmp.eq.s32.totalorder %s21, 0
      %p91 = por %p89, %p90
      %p92 = scmp.ne.s32.totalorder %s78, %s79
      %p93 = scmp.eq.s32.totalorder %s22, 1
      %p94 = por %p92, %p93
      %p96 = scmp.ne.s32.totalorder %s79, %s95
      %p97 = scmp.eq.s32.totalorder %s22, 0
      %p98 = por %p96, %p97
      %s99 = ssub.s32 %s24, %s38
      %p100 = scmp.eq.s32.totalorder %s99, 0
      %s102 = sadd.s32 %s101, 1
      %s103 = scalar_select %p100, %s101, %s102
      %p106 = pneg %p100
      %p107 = scmp.eq.s32.totalorder %s16, 1
      %p108 = por %p106, %p107
      %p109 = scmp.ne.s32.totalorder %s101, %s104
      %p110 = scmp.eq.s32.totalorder %s16, 0
      %p111 = por %p109, %p110
      %p112 = scmp.ne.s32.totalorder %s101, %s104
      %p113 = scmp.eq.s32.totalorder %s21, 1
      %p114 = por %p112, %p113
      %p115 = scmp.ne.s32.totalorder %s104, %s105
      %p116 = scmp.eq.s32.totalorder %s21, 0
      %p117 = por %p115, %p116
      %p118 = scmp.ne.s32.totalorder %s104, %s105
      %p119 = scmp.eq.s32.totalorder %s22, 1
      %p120 = por %p118, %p119
      %p122 = scmp.ne.s32.totalorder %s105, %s121
      %p123 = scmp.eq.s32.totalorder %s22, 0
      %p124 = por %p122, %p123
      %s125 = ssub.s32 %s23, %s42
      %s126 = ssub.s32 %s24, %s38
      %s127 = sor.u32 %s125, %s126
      %p128 = scmp.eq.s32.totalorder %s127, 0
      %s130 = sadd.s32 %s129, 1
      %s131 = scalar_select %p128, %s129, %s130
      %p134 = pneg %p128
      %p135 = scmp.eq.s32.totalorder %s16, 1
      %p136 = por %p134, %p135
      %p137 = scmp.ne.s32.totalorder %s129, %s132
      %p138 = scmp.eq.s32.totalorder %s16, 0
      %p139 = por %p137, %p138
      %p140 = scmp.ne.s32.totalorder %s129, %s132
      %p141 = scmp.eq.s32.totalorder %s21, 1
      %p142 = por %p140, %p141
      %p143 = scmp.ne.s32.totalorder %s132, %s133
      %p144 = scmp.eq.s32.totalorder %s21, 0
      %p145 = por %p143, %p144
      %p146 = scmp.ne.s32.totalorder %s132, %s133
      %p147 = scmp.eq.s32.totalorder %s22, 1
      %p148 = por %p146, %p147
      %p150 = scmp.ne.s32.totalorder %s133, %s149
      %p151 = scmp.eq.s32.totalorder %s22, 0
      %p152 = por %p150, %p151
      %p153 = scmp.le.s32.totalorder 1, %s16
      %p154 = scmp.lt.s32.totalorder %s16, 3
      %p155 = pnand %p153, %p154
      %p156 = pneg %p155
      // Predicated region
      $region9: #{conv2d.1} parent=5 // pred_check
        _
      $region10: #{conv2d.1} parent=5 // pred_check_branch
        %158 = sbr.rel (%p155) target = $region12
      $region11: #{conv2d.1} parent=5 // pred_region
        %s159 = ssub.s32 %s16, 1
        // Predicated region
        $region13: #{conv2d.1} parent=11 // pred_check
          %p160 = pneg %p91
        $region14: #{conv2d.1} parent=11 // pred_check_branch
          %162 = sbr.rel (%p160) target = $region16
        $region15: #{conv2d.1} parent=11 // pred_region
          %s163 = smul.u32 16, %s28
          %s164 = smul.u32 3, %s27
          %s166 = ssub.s32 3072, 3072
          %167 = vsyncadd [#allocation7], %s166
          %s168 = smul.addr %s163, 3
          %s169 = sadd.s32 %s164, %s168
          %s170 = smul.addr %s169, 64
          %s171 = scalar_lea.hbm %s1, %s170
          %s172 = sshll.u32 [#allocation6], 4
          %s173 = int_to_ptr.vmem [resolvable:$true] %s172
          %178 = dma.hbm_to_vmem [thread:$0]  %s171, 3072, %s173, [#allocation7], 192, 192, 12
        $region16: #{conv2d.1} parent=11 // pred_fallthru
          _
        // Predicated region
        $region17: #{conv2d.1} parent=11 // pred_check
          %p179 = pneg %p117
        $region18: #{conv2d.1} parent=11 // pred_check_branch
          %181 = sbr.rel (%p179) target = $region20
        $region19: #{conv2d.1} parent=11 // pred_region
          %s182 = smul.u32 3, %s27
          %s184 = ssub.s32 48, 48
          %185 = vsyncadd [#allocation7], %s184
          %s186 = smul.addr %s182, 16
          %s187 = scalar_lea.hbm %s2, %s186
          %s189 = sshll.u32 [#allocation8], 4
          %s190 = int_to_ptr.vmem [resolvable:$true] %s189
          %192 = dma.hbm_to_vmem [thread:$0]  %s187, 48, %s190, [#allocation7]
        $region20: #{conv2d.1} parent=11 // pred_fallthru
          _
      $region12: #{conv2d.1} parent=5 // pred_fallthru
        _
      %p193 = scmp.lt.s32.totalorder %s16, 2
      // Predicated region
      $region21: #{conv2d.1} parent=5 // pred_check
        %p194 = pneg %p193
      $region22: #{conv2d.1} parent=5 // pred_check_branch
        %196 = sbr.rel (%p194) target = $region24
      $region23: #{conv2d.1} parent=5 // pred_region
        // Predicated region
        $region25: #{conv2d.1} parent=23 // pred_check
          %p197 = pneg %p57
        $region26: #{conv2d.1} parent=23 // pred_check_branch
          %199 = sbr.rel (%p197) target = $region28
        $region27: #{conv2d.1} parent=23 // pred_region
          %s200 = sand.u32 %s47, 1
          %s201 = scalar_lea.sflag [#allocation4], %s200
          %s202 = sand.u32 %s47, 1
          %s203 = smul.addr %s202, 128
          %s204 = scalar_lea.vmem [#allocation3], %s203
          %s205 = smul.u32 32, %s23
          %s207 = ssub.s32 2048, 2048
          %208 = vsyncadd %s201, %s207
          %s209 = sadd.s32 %s25, %s205
          %s210 = smul.addr %s209, 64
          %s211 = scalar_lea.hbm %s0, %s210
          %s212 = sshll.u32 %s204, 4
          %s213 = int_to_ptr.vmem [resolvable:$true] %s212
          %218 = dma.hbm_to_vmem [thread:$0]  %s211, 2048, %s213, %s201, 64, 64, 4
        $region28: #{conv2d.1} parent=23 // pred_fallthru
          _
      $region24: #{conv2d.1} parent=5 // pred_fallthru
        _
      %p219 = scmp.le.s32.totalorder 1, %s16
      %p220 = scmp.lt.s32.totalorder %s16, 3
      %p221 = pnand %p219, %p220
      %p222 = pneg %p221
      // Predicated region
      $region29: #{conv2d.1} parent=5 // pred_check
        _
      $region30: #{conv2d.1} parent=5 // pred_check_branch
        %224 = sbr.rel (%p221) target = $region32
      $region31: #{conv2d.1} parent=5 // pred_region
        %s225 = ssub.s32 %s16, 1
        %s226 = sand.u32 %s50, 1
        %s227 = scalar_lea.sflag [#allocation4], %s226
        %s228 = sand.u32 %s50, 1
        %s229 = smul.addr %s228, 128
        %s230 = scalar_lea.vmem [#allocation3], %s229
        // Predicated region
        $region33: #{conv2d.1} parent=31 // pred_check
          %p231 = pneg %p63
        $region34: #{conv2d.1} parent=31 // pred_check_branch
          %233 = sbr.rel (%p231) target = $region36
        $region35: #{conv2d.1} parent=31 // pred_region
          %234 = dma.done %s227, 2048
        $region36: #{conv2d.1} parent=31 // pred_fallthru
          _
        // Predicated region
        $region37: #{conv2d.1} parent=31 // pred_check
          %p235 = pneg %p91
        $region38: #{conv2d.1} parent=31 // pred_check_branch
          %237 = sbr.rel (%p235) target = $region40
        $region39: #{conv2d.1} parent=31 // pred_region
          %238 = dma.done [#allocation7], 3072
        $region40: #{conv2d.1} parent=31 // pred_fallthru
          _
        // Predicated region
        $region41: #{conv2d.1} parent=31 // pred_check
          %p239 = pneg %p117
        $region42: #{conv2d.1} parent=31 // pred_check_branch
          %241 = sbr.rel (%p239) target = $region44
        $region43: #{conv2d.1} parent=31 // pred_region
          %242 = dma.done [#allocation7], 48
        $region44: #{conv2d.1} parent=31 // pred_fallthru
          _
        %s243 = sand.u32 %s50, 1
        %s244 = scalar_lea.sflag [#allocation4], %s243
        %s245 = sand.u32 %s50, 1
        %s246 = smul.addr %s245, 128
        %s247 = scalar_lea.vmem [#allocation3], %s246
        %p248 = pneg %p63
        %p249 = pneg %p60
        %p250 = pneg %p91
        %p251 = pneg %p88
        %p252 = pneg %p117
        %p253 = pneg %p114
        %p254 = pneg %p145
        %p255 = pneg %p142
        %s256 = sand.u32 %s132, 1
        %s257 = scalar_lea.sflag [#allocation5], %s256
        %s258 = sand.u32 %s132, 1
        %s259 = smul.addr %s258, 768
        %s260 = scalar_lea.vmem [#allocation9], %s259
        %s261 = smul.u32 32, %s26
        %s262 = smul.u32 16, %s28
        %s263 = smul.u32 3, %s27
        %s264 = smul.u32 3, %s27
        %s265 = smul.u32 32, %s26
        %s266 = smul.u32 3, %s27
        %p268 = scmp.eq.s32.totalorder %s28, 0
        // Predicated region
        $region45: #{conv2d.1} parent=31 // pred_check
          %p269 = pneg %p268
        $region46: #{conv2d.1} parent=31 // pred_check_branch
          %271 = sbr.rel (%p269) target = $region48
        $region47: #{conv2d.1} parent=31 // pred_region
          %272 = vst [vmem:[#allocation2] sm:$0xff] 0.0
          %273 = vst [vmem:[#allocation2 + $0x8] sm:$0xff] 0.0
          %vm274 = vcmask 523264
          %275 = vst.msk [vmem:[#allocation2 + $0x10] sm:$0xff] %vm274, 0.0
          %276 = vst [vmem:[#allocation2 + $0x18] sm:$0xff] 0.0
          %277 = vst [vmem:[#allocation2 + $0x20] sm:$0xff] 0.0
          %278 = vst.msk [vmem:[#allocation2 + $0x28] sm:$0xff] %vm274, 0.0
          %279 = vst [vmem:[#allocation2 + $0x30] sm:$0xff] 0.0
          %280 = vst [vmem:[#allocation2 + $0x38] sm:$0xff] 0.0
          %281 = vst.msk [vmem:[#allocation2 + $0x40] sm:$0xff] %vm274, 0.0
          %282 = vst [vmem:[#allocation2 + $0x48] sm:$0xff] 0.0
          %283 = vst [vmem:[#allocation2 + $0x50] sm:$0xff] 0.0
          %284 = vst.msk [vmem:[#allocation2 + $0x58] sm:$0xff] %vm274, 0.0
          %285 = vst [vmem:[#allocation2 + $0x60] sm:$0xff] 0.0
          %286 = vst [vmem:[#allocation2 + $0x68] sm:$0xff] 0.0
          %287 = vst.msk [vmem:[#allocation2 + $0x70] sm:$0xff] %vm274, 0.0
          %288 = vst [vmem:[#allocation2 + $0x78] sm:$0xff] 0.0
          %289 = vst [vmem:[#allocation2 + $0x80] sm:$0xff] 0.0
          %290 = vst.msk [vmem:[#allocation2 + $0x88] sm:$0xff] %vm274, 0.0
          %291 = vst [vmem:[#allocation2 + $0x90] sm:$0xff] 0.0
          %292 = vst [vmem:[#allocation2 + $0x98] sm:$0xff] 0.0
          %293 = vst.msk [vmem:[#allocation2 + $0xa0] sm:$0xff] %vm274, 0.0
          %294 = vst [vmem:[#allocation2 + $0xa8] sm:$0xff] 0.0
          %295 = vst [vmem:[#allocation2 + $0xb0] sm:$0xff] 0.0
          %296 = vst.msk [vmem:[#allocation2 + $0xb8] sm:$0xff] %vm274, 0.0
          %297 = vst [vmem:[#allocation2 + $0xc0] sm:$0xff] 0.0
          %298 = vst [vmem:[#allocation2 + $0xc8] sm:$0xff] 0.0
          %299 = vst.msk [vmem:[#allocation2 + $0xd0] sm:$0xff] %vm274, 0.0
          %300 = vst [vmem:[#allocation2 + $0xd8] sm:$0xff] 0.0
          %301 = vst [vmem:[#allocation2 + $0xe0] sm:$0xff] 0.0
          %302 = vst.msk [vmem:[#allocation2 + $0xe8] sm:$0xff] %vm274, 0.0
          %303 = vst [vmem:[#allocation2 + $0xf0] sm:$0xff] 0.0
          %304 = vst [vmem:[#allocation2 + $0xf8] sm:$0xff] 0.0
          %305 = vst.msk [vmem:[#allocation2 + $0x100] sm:$0xff] %vm274, 0.0
          %306 = vst [vmem:[#allocation2 + $0x108] sm:$0xff] 0.0
          %307 = vst [vmem:[#allocation2 + $0x110] sm:$0xff] 0.0
          %308 = vst.msk [vmem:[#allocation2 + $0x118] sm:$0xff] %vm274, 0.0
          %309 = vst [vmem:[#allocation2 + $0x120] sm:$0xff] 0.0
          %310 = vst [vmem:[#allocation2 + $0x128] sm:$0xff] 0.0
          %311 = vst.msk [vmem:[#allocation2 + $0x130] sm:$0xff] %vm274, 0.0
          %312 = vst [vmem:[#allocation2 + $0x138] sm:$0xff] 0.0
          %313 = vst [vmem:[#allocation2 + $0x140] sm:$0xff] 0.0
          %314 = vst.msk [vmem:[#allocation2 + $0x148] sm:$0xff] %vm274, 0.0
          %315 = vst [vmem:[#allocation2 + $0x150] sm:$0xff] 0.0
          %316 = vst [vmem:[#allocation2 + $0x158] sm:$0xff] 0.0
          %317 = vst.msk [vmem:[#allocation2 + $0x160] sm:$0xff] %vm274, 0.0
          %318 = vst [vmem:[#allocation2 + $0x168] sm:$0xff] 0.0
          %319 = vst [vmem:[#allocation2 + $0x170] sm:$0xff] 0.0
          %320 = vst.msk [vmem:[#allocation2 + $0x178] sm:$0xff] %vm274, 0.0
          %321 = vst [vmem:[#allocation2 + $0x180] sm:$0xff] 0.0
          %322 = vst [vmem:[#allocation2 + $0x188] sm:$0xff] 0.0
          %323 = vst.msk [vmem:[#allocation2 + $0x190] sm:$0xff] %vm274, 0.0
          %324 = vst [vmem:[#allocation2 + $0x198] sm:$0xff] 0.0
          %325 = vst [vmem:[#allocation2 + $0x1a0] sm:$0xff] 0.0
          %326 = vst.msk [vmem:[#allocation2 + $0x1a8] sm:$0xff] %vm274, 0.0
          %327 = vst [vmem:[#allocation2 + $0x1b0] sm:$0xff] 0.0
          %328 = vst [vmem:[#allocation2 + $0x1b8] sm:$0xff] 0.0
          %329 = vst.msk [vmem:[#allocation2 + $0x1c0] sm:$0xff] %vm274, 0.0
          %330 = vst [vmem:[#allocation2 + $0x1c8] sm:$0xff] 0.0
          %331 = vst [vmem:[#allocation2 + $0x1d0] sm:$0xff] 0.0
          %332 = vst.msk [vmem:[#allocation2 + $0x1d8] sm:$0xff] %vm274, 0.0
          %333 = vst [vmem:[#allocation2 + $0x1e0] sm:$0xff] 0.0
          %334 = vst [vmem:[#allocation2 + $0x1e8] sm:$0xff] 0.0
          %335 = vst.msk [vmem:[#allocation2 + $0x1f0] sm:$0xff] %vm274, 0.0
          %336 = vst [vmem:[#allocation2 + $0x1f8] sm:$0xff] 0.0
          %337 = vst [vmem:[#allocation2 + $0x200] sm:$0xff] 0.0
          %338 = vst.msk [vmem:[#allocation2 + $0x208] sm:$0xff] %vm274, 0.0
          %339 = vst [vmem:[#allocation2 + $0x210] sm:$0xff] 0.0
          %340 = vst [vmem:[#allocation2 + $0x218] sm:$0xff] 0.0
          %341 = vst.msk [vmem:[#allocation2 + $0x220] sm:$0xff] %vm274, 0.0
          %342 = vst [vmem:[#allocation2 + $0x228] sm:$0xff] 0.0
          %343 = vst [vmem:[#allocation2 + $0x230] sm:$0xff] 0.0
          %344 = vst.msk [vmem:[#allocation2 + $0x238] sm:$0xff] %vm274, 0.0
          %345 = vst [vmem:[#allocation2 + $0x240] sm:$0xff] 0.0
          %346 = vst [vmem:[#allocation2 + $0x248] sm:$0xff] 0.0
          %347 = vst.msk [vmem:[#allocation2 + $0x250] sm:$0xff] %vm274, 0.0
          %348 = vst [vmem:[#allocation2 + $0x258] sm:$0xff] 0.0
          %349 = vst [vmem:[#allocation2 + $0x260] sm:$0xff] 0.0
          %350 = vst.msk [vmem:[#allocation2 + $0x268] sm:$0xff] %vm274, 0.0
          %351 = vst [vmem:[#allocation2 + $0x270] sm:$0xff] 0.0
          %352 = vst [vmem:[#allocation2 + $0x278] sm:$0xff] 0.0
          %353 = vst.msk [vmem:[#allocation2 + $0x280] sm:$0xff] %vm274, 0.0
          %354 = vst [vmem:[#allocation2 + $0x288] sm:$0xff] 0.0
          %355 = vst [vmem:[#allocation2 + $0x290] sm:$0xff] 0.0
          %356 = vst.msk [vmem:[#allocation2 + $0x298] sm:$0xff] %vm274, 0.0
          %357 = vst [vmem:[#allocation2 + $0x2a0] sm:$0xff] 0.0
          %358 = vst [vmem:[#allocation2 + $0x2a8] sm:$0xff] 0.0
          %359 = vst.msk [vmem:[#allocation2 + $0x2b0] sm:$0xff] %vm274, 0.0
          %360 = vst [vmem:[#allocation2 + $0x2b8] sm:$0xff] 0.0
          %361 = vst [vmem:[#allocation2 + $0x2c0] sm:$0xff] 0.0
          %362 = vst.msk [vmem:[#allocation2 + $0x2c8] sm:$0xff] %vm274, 0.0
          %363 = vst [vmem:[#allocation2 + $0x2d0] sm:$0xff] 0.0
          %364 = vst [vmem:[#allocation2 + $0x2d8] sm:$0xff] 0.0
          %365 = vst.msk [vmem:[#allocation2 + $0x2e0] sm:$0xff] %vm274, 0.0
          %366 = vst [vmem:[#allocation2 + $0x2e8] sm:$0xff] 0.0
          %367 = vst [vmem:[#allocation2 + $0x2f0] sm:$0xff] 0.0
          %368 = vst.msk [vmem:[#allocation2 + $0x2f8] sm:$0xff] %vm274, 0.0
        $region48: #{conv2d.1} parent=31 // pred_fallthru
          _
        %v369 = vld [vmem:[#allocation2] sm:$0xff]
        %v370 = vld [vmem:[#allocation2 + $0x8] sm:$0xff]
        %v371 = vld [vmem:[#allocation2 + $0x10] sm:$0xff]
        %v372 = vld [vmem:[#allocation2 + $0x18] sm:$0xff]
        %v373 = vld [vmem:[#allocation2 + $0x20] sm:$0xff]
        %v374 = vld [vmem:[#allocation2 + $0x28] sm:$0xff]
        %v375 = vld [vmem:[#allocation2 + $0x30] sm:$0xff]
        %v376 = vld [vmem:[#allocation2 + $0x38] sm:$0xff]
        %v377 = vld [vmem:[#allocation2 + $0x40] sm:$0xff]
        %v378 = vld [vmem:[#allocation2 + $0x48] sm:$0xff]
        %v379 = vld [vmem:[#allocation2 + $0x50] sm:$0xff]
        %v380 = vld [vmem:[#allocation2 + $0x58] sm:$0xff]
        %v381 = vld [vmem:[#allocation2 + $0x60] sm:$0xff]
        %v382 = vld [vmem:[#allocation2 + $0x68] sm:$0xff]
        %v383 = vld [vmem:[#allocation2 + $0x70] sm:$0xff]
        %v384 = vld [vmem:[#allocation2 + $0x78] sm:$0xff]
        %v385 = vld [vmem:[#allocation2 + $0x80] sm:$0xff]
        %v386 = vld [vmem:[#allocation2 + $0x88] sm:$0xff]
        %v387 = vld [vmem:[#allocation2 + $0x90] sm:$0xff]
        %v388 = vld [vmem:[#allocation2 + $0x98] sm:$0xff]
        %v389 = vld [vmem:[#allocation2 + $0xa0] sm:$0xff]
        %v390 = vld [vmem:[#allocation2 + $0xa8] sm:$0xff]
        %v391 = vld [vmem:[#allocation2 + $0xb0] sm:$0xff]
        %v392 = vld [vmem:[#allocation2 + $0xb8] sm:$0xff]
        %v393 = vld [vmem:[#allocation2 + $0xc0] sm:$0xff]
        %v394 = vld [vmem:[#allocation2 + $0xc8] sm:$0xff]
        %v395 = vld [vmem:[#allocation2 + $0xd0] sm:$0xff]
        %v396 = vld [vmem:[#allocation2 + $0xd8] sm:$0xff]
        %v397 = vld [vmem:[#allocation2 + $0xe0] sm:$0xff]
        %v398 = vld [vmem:[#allocation2 + $0xe8] sm:$0xff]
        %v399 = vld [vmem:[#allocation2 + $0xf0] sm:$0xff]
        %v400 = vld [vmem:[#allocation2 + $0xf8] sm:$0xff]
        %v401 = vld [vmem:[#allocation2 + $0x100] sm:$0xff]
        %v402 = vld [vmem:[#allocation2 + $0x108] sm:$0xff]
        %v403 = vld [vmem:[#allocation2 + $0x110] sm:$0xff]
        %v404 = vld [vmem:[#allocation2 + $0x118] sm:$0xff]
        %v405 = vld [vmem:[#allocation2 + $0x120] sm:$0xff]
        %v406 = vld [vmem:[#allocation2 + $0x128] sm:$0xff]
        %v407 = vld [vmem:[#allocation2 + $0x130] sm:$0xff]
        %v408 = vld [vmem:[#allocation2 + $0x138] sm:$0xff]
        %v409 = vld [vmem:[#allocation2 + $0x140] sm:$0xff]
        %v410 = vld [vmem:[#allocation2 + $0x148] sm:$0xff]
        %v411 = vld [vmem:[#allocation2 + $0x150] sm:$0xff]
        %v412 = vld [vmem:[#allocation2 + $0x158] sm:$0xff]
        %v413 = vld [vmem:[#allocation2 + $0x160] sm:$0xff]
        %v414 = vld [vmem:[#allocation2 + $0x168] sm:$0xff]
        %v415 = vld [vmem:[#allocation2 + $0x170] sm:$0xff]
        %v416 = vld [vmem:[#allocation2 + $0x178] sm:$0xff]
        %v417 = vld [vmem:[#allocation2 + $0x180] sm:$0xff]
        %v418 = vld [vmem:[#allocation2 + $0x188] sm:$0xff]
        %v419 = vld [vmem:[#allocation2 + $0x190] sm:$0xff]
        %v420 = vld [vmem:[#allocation2 + $0x198] sm:$0xff]
        %v421 = vld [vmem:[#allocation2 + $0x1a0] sm:$0xff]
        %v422 = vld [vmem:[#allocation2 + $0x1a8] sm:$0xff]
        %v423 = vld [vmem:[#allocation2 + $0x1b0] sm:$0xff]
        %v424 = vld [vmem:[#allocation2 + $0x1b8] sm:$0xff]
        %v425 = vld [vmem:[#allocation2 + $0x1c0] sm:$0xff]
        %v426 = vld [vmem:[#allocation2 + $0x1c8] sm:$0xff]
        %v427 = vld [vmem:[#allocation2 + $0x1d0] sm:$0xff]
        %v428 = vld [vmem:[#allocation2 + $0x1d8] sm:$0xff]
        %v429 = vld [vmem:[#allocation2 + $0x1e0] sm:$0xff]
        %v430 = vld [vmem:[#allocation2 + $0x1e8] sm:$0xff]
        %v431 = vld [vmem:[#allocation2 + $0x1f0] sm:$0xff]
        %v432 = vld [vmem:[#allocation2 + $0x1f8] sm:$0xff]
        %v433 = vld [vmem:[#allocation2 + $0x200] sm:$0xff]
        %v434 = vld [vmem:[#allocation2 + $0x208] sm:$0xff]
        %v435 = vld [vmem:[#allocation2 + $0x210] sm:$0xff]
        %v436 = vld [vmem:[#allocation2 + $0x218] sm:$0xff]
        %v437 = vld [vmem:[#allocation2 + $0x220] sm:$0xff]
        %v438 = vld [vmem:[#allocation2 + $0x228] sm:$0xff]
        %v439 = vld [vmem:[#allocation2 + $0x230] sm:$0xff]
        %v440 = vld [vmem:[#allocation2 + $0x238] sm:$0xff]
        %v441 = vld [vmem:[#allocation2 + $0x240] sm:$0xff]
        %v442 = vld [vmem:[#allocation2 + $0x248] sm:$0xff]
        %v443 = vld [vmem:[#allocation2 + $0x250] sm:$0xff]
        %v444 = vld [vmem:[#allocation2 + $0x258] sm:$0xff]
        %v445 = vld [vmem:[#allocation2 + $0x260] sm:$0xff]
        %v446 = vld [vmem:[#allocation2 + $0x268] sm:$0xff]
        %v447 = vld [vmem:[#allocation2 + $0x270] sm:$0xff]
        %v448 = vld [vmem:[#allocation2 + $0x278] sm:$0xff]
        %v449 = vld [vmem:[#allocation2 + $0x280] sm:$0xff]
        %v450 = vld [vmem:[#allocation2 + $0x288] sm:$0xff]
        %v451 = vld [vmem:[#allocation2 + $0x290] sm:$0xff]
        %v452 = vld [vmem:[#allocation2 + $0x298] sm:$0xff]
        %v453 = vld [vmem:[#allocation2 + $0x2a0] sm:$0xff]
        %v454 = vld [vmem:[#allocation2 + $0x2a8] sm:$0xff]
        %v455 = vld [vmem:[#allocation2 + $0x2b0] sm:$0xff]
        %v456 = vld [vmem:[#allocation2 + $0x2b8] sm:$0xff]
        %v457 = vld [vmem:[#allocation2 + $0x2c0] sm:$0xff]
        %v458 = vld [vmem:[#allocation2 + $0x2c8] sm:$0xff]
        %v459 = vld [vmem:[#allocation2 + $0x2d0] sm:$0xff]
        %v460 = vld [vmem:[#allocation2 + $0x2d8] sm:$0xff]
        %v461 = vld [vmem:[#allocation2 + $0x2e0] sm:$0xff]
        %v462 = vld [vmem:[#allocation2 + $0x2e8] sm:$0xff]
        %v463 = vld [vmem:[#allocation2 + $0x2f0] sm:$0xff]
        %v464 = vld [vmem:[#allocation2 + $0x2f8] sm:$0xff]
        %v465 = vld [vmem:[%s230] sm:$0xf]
        %v466 = vld [vmem:[%s230 + $0x4] sm:$0xf]
        %v467 = vld [vmem:[%s230 + $0x8] sm:$0xf]
        %v468 = vld [vmem:[%s230 + $0xc] sm:$0xf]
        %v469 = vld [vmem:[%s230 + $0x10] sm:$0xf]
        %v470 = vld [vmem:[%s230 + $0x14] sm:$0xf]
        %v471 = vld [vmem:[%s230 + $0x18] sm:$0xf]
        %v472 = vld [vmem:[%s230 + $0x1c] sm:$0xf]
        %v473 = vld [vmem:[%s230 + $0x20] sm:$0xf]
        %v474 = vld [vmem:[%s230 + $0x24] sm:$0xf]
        %v475 = vld [vmem:[%s230 + $0x28] sm:$0xf]
        %v476 = vld [vmem:[%s230 + $0x2c] sm:$0xf]
        %v477 = vld [vmem:[%s230 + $0x30] sm:$0xf]
        %v478 = vld [vmem:[%s230 + $0x34] sm:$0xf]
        %v479 = vld [vmem:[%s230 + $0x38] sm:$0xf]
        %v480 = vld [vmem:[%s230 + $0x3c] sm:$0xf]
        %v481 = vld [vmem:[%s230 + $0x40] sm:$0xf]
        %v482 = vld [vmem:[%s230 + $0x44] sm:$0xf]
        %v483 = vld [vmem:[%s230 + $0x48] sm:$0xf]
        %v484 = vld [vmem:[%s230 + $0x4c] sm:$0xf]
        %v485 = vld [vmem:[%s230 + $0x50] sm:$0xf]
        %v486 = vld [vmem:[%s230 + $0x54] sm:$0xf]
        %v487 = vld [vmem:[%s230 + $0x58] sm:$0xf]
        %v488 = vld [vmem:[%s230 + $0x5c] sm:$0xf]
        %v489 = vld [vmem:[%s230 + $0x60] sm:$0xf]
        %v490 = vld [vmem:[%s230 + $0x64] sm:$0xf]
        %v491 = vld [vmem:[%s230 + $0x68] sm:$0xf]
        %v492 = vld [vmem:[%s230 + $0x6c] sm:$0xf]
        %v493 = vld [vmem:[%s230 + $0x70] sm:$0xf]
        %v494 = vld [vmem:[%s230 + $0x74] sm:$0xf]
        %v495 = vld [vmem:[%s230 + $0x78] sm:$0xf]
        %v496 = vld [vmem:[%s230 + $0x7c] sm:$0xf]
        %v497 = vld [vmem:[#allocation6] sm:$0xff]
        %v498 = vld [vmem:[#allocation6 + $0x8] sm:$0xf]
        %v499 = vld [vmem:[#allocation6 + $0xc] sm:$0xff]
        %v500 = vld [vmem:[#allocation6 + $0x14] sm:$0xf]
        %v501 = vld [vmem:[#allocation6 + $0x18] sm:$0xff]
        %v502 = vld [vmem:[#allocation6 + $0x20] sm:$0xf]
        %v503 = vld [vmem:[#allocation6 + $0x24] sm:$0xff]
        %v504 = vld [vmem:[#allocation6 + $0x2c] sm:$0xf]
        %v505 = vld [vmem:[#allocation6 + $0x30] sm:$0xff]
        %v506 = vld [vmem:[#allocation6 + $0x38] sm:$0xf]
        %v507 = vld [vmem:[#allocation6 + $0x3c] sm:$0xff]
        %v508 = vld [vmem:[#allocation6 + $0x44] sm:$0xf]
        %v509 = vld [vmem:[#allocation6 + $0x48] sm:$0xff]
        %v510 = vld [vmem:[#allocation6 + $0x50] sm:$0xf]
        %v511 = vld [vmem:[#allocation6 + $0x54] sm:$0xff]
        %v512 = vld [vmem:[#allocation6 + $0x5c] sm:$0xf]
        %v513 = vld [vmem:[#allocation6 + $0x60] sm:$0xff]
        %v514 = vld [vmem:[#allocation6 + $0x68] sm:$0xf]
        %v515 = vld [vmem:[#allocation6 + $0x6c] sm:$0xff]
        %v516 = vld [vmem:[#allocation6 + $0x74] sm:$0xf]
        %v517 = vld [vmem:[#allocation6 + $0x78] sm:$0xff]
        %v518 = vld [vmem:[#allocation6 + $0x80] sm:$0xf]
        %v519 = vld [vmem:[#allocation6 + $0x84] sm:$0xff]
        %v520 = vld [vmem:[#allocation6 + $0x8c] sm:$0xf]
        %v521 = vld [vmem:[#allocation6 + $0x90] sm:$0xff]
        %v522 = vld [vmem:[#allocation6 + $0x98] sm:$0xf]
        %v523 = vld [vmem:[#allocation6 + $0x9c] sm:$0xff]
        %v524 = vld [vmem:[#allocation6 + $0xa4] sm:$0xf]
        %v525 = vld [vmem:[#allocation6 + $0xa8] sm:$0xff]
        %v526 = vld [vmem:[#allocation6 + $0xb0] sm:$0xf]
        %v527 = vld [vmem:[#allocation6 + $0xb4] sm:$0xff]
        %v528 = vld [vmem:[#allocation6 + $0xbc] sm:$0xf]
        %v561 = vunpack.c.l.b16 %v465
        %v562 = vunpack.c.l.b16 %v466
        %v563 = vunpack.c.l.b16 %v467
        %v564 = vunpack.c.l.b16 %v468
        %v565 = vunpack.c.l.b16 %v469
        %v566 = vunpack.c.l.b16 %v470
        %v567 = vunpack.c.l.b16 %v471
        %v568 = vunpack.c.l.b16 %v472
        %v569 = vunpack.c.l.b16 %v473
        %v570 = vunpack.c.l.b16 %v474
        %v571 = vunpack.c.l.b16 %v475
        %v572 = vunpack.c.l.b16 %v476
        %v573 = vunpack.c.l.b16 %v477
        %v574 = vunpack.c.l.b16 %v478
        %v575 = vunpack.c.l.b16 %v479
        %v576 = vunpack.c.l.b16 %v480
        %v577 = vunpack.c.l.b16 %v481
        %v578 = vunpack.c.l.b16 %v482
        %v579 = vunpack.c.l.b16 %v483
        %v580 = vunpack.c.l.b16 %v484
        %v581 = vunpack.c.l.b16 %v485
        %v582 = vunpack.c.l.b16 %v486
        %v583 = vunpack.c.l.b16 %v487
        %v584 = vunpack.c.l.b16 %v488
        %v585 = vunpack.c.l.b16 %v489
        %v586 = vunpack.c.l.b16 %v490
        %v587 = vunpack.c.l.b16 %v491
        %v588 = vunpack.c.l.b16 %v492
        %v589 = vunpack.c.l.b16 %v493
        %v590 = vunpack.c.l.b16 %v494
        %v591 = vunpack.c.l.b16 %v495
        %v592 = vunpack.c.l.b16 %v496
        %v593 = vpack.c.b16 %v562, %v561
        %v594 = vpack.c.b16 %v564, %v563
        %v595 = vpack.c.b16 %v566, %v565
        %v596 = vpack.c.b16 %v568, %v567
        %v597 = vpack.c.b16 %v570, %v569
        %v598 = vpack.c.b16 %v572, %v571
        %v599 = vpack.c.b16 %v574, %v573
        %v600 = vpack.c.b16 %v576, %v575
        %v601 = vpack.c.b16 %v578, %v577
        %v602 = vpack.c.b16 %v580, %v579
        %v603 = vpack.c.b16 %v582, %v581
        %v604 = vpack.c.b16 %v584, %v583
        %v605 = vpack.c.b16 %v586, %v585
        %v606 = vpack.c.b16 %v588, %v587
        %v607 = vpack.c.b16 %v590, %v589
        %v608 = vpack.c.b16 %v592, %v591
        %v657 = vunpack.c.l.b16 %v497
        %v658 = vunpack.c.h.b16 %v497
        %v659 = vunpack.c.l.b16 %v498
        %v660 = vunpack.c.l.b16 %v499
        %v661 = vunpack.c.h.b16 %v499
        %v662 = vunpack.c.l.b16 %v500
        %v663 = vunpack.c.l.b16 %v501
        %v664 = vunpack.c.h.b16 %v501
        %v665 = vunpack.c.l.b16 %v502
        %v666 = vunpack.c.l.b16 %v503
        %v667 = vunpack.c.h.b16 %v503
        %v668 = vunpack.c.l.b16 %v504
        %v669 = vunpack.c.l.b16 %v505
        %v670 = vunpack.c.h.b16 %v505
        %v671 = vunpack.c.l.b16 %v506
        %v672 = vunpack.c.l.b16 %v507
        %v673 = vunpack.c.h.b16 %v507
        %v674 = vunpack.c.l.b16 %v508
        %v675 = vunpack.c.l.b16 %v509
        %v676 = vunpack.c.h.b16 %v509
        %v677 = vunpack.c.l.b16 %v510
        %v678 = vunpack.c.l.b16 %v511
        %v679 = vunpack.c.h.b16 %v511
        %v680 = vunpack.c.l.b16 %v512
        %v681 = vunpack.c.l.b16 %v513
        %v682 = vunpack.c.h.b16 %v513
        %v683 = vunpack.c.l.b16 %v514
        %v684 = vunpack.c.l.b16 %v515
        %v685 = vunpack.c.h.b16 %v515
        %v686 = vunpack.c.l.b16 %v516
        %v687 = vunpack.c.l.b16 %v517
        %v688 = vunpack.c.h.b16 %v517
        %v689 = vunpack.c.l.b16 %v518
        %v690 = vunpack.c.l.b16 %v519
        %v691 = vunpack.c.h.b16 %v519
        %v692 = vunpack.c.l.b16 %v520
        %v693 = vunpack.c.l.b16 %v521
        %v694 = vunpack.c.h.b16 %v521
        %v695 = vunpack.c.l.b16 %v522
        %v696 = vunpack.c.l.b16 %v523
        %v697 = vunpack.c.h.b16 %v523
        %v698 = vunpack.c.l.b16 %v524
        %v699 = vunpack.c.l.b16 %v525
        %v700 = vunpack.c.h.b16 %v525
        %v701 = vunpack.c.l.b16 %v526
        %v702 = vunpack.c.l.b16 %v527
        %v703 = vunpack.c.h.b16 %v527
        %v704 = vunpack.c.l.b16 %v528
        %v705 = vpack.c.b16 %v660, %v657
        %v706 = vpack.c.b16 %v661, %v658
        %v707 = vpack.c.b16 %v662, %v659
        %v708 = vpack.c.b16 %v666, %v663
        %v709 = vpack.c.b16 %v667, %v664
        %v710 = vpack.c.b16 %v668, %v665
        %v711 = vpack.c.b16 %v672, %v669
        %v712 = vpack.c.b16 %v673, %v670
        %v713 = vpack.c.b16 %v674, %v671
        %v714 = vpack.c.b16 %v678, %v675
        %v715 = vpack.c.b16 %v679, %v676
        %v716 = vpack.c.b16 %v680, %v677
        %v717 = vpack.c.b16 %v684, %v681
        %v718 = vpack.c.b16 %v685, %v682
        %v719 = vpack.c.b16 %v686, %v683
        %v720 = vpack.c.b16 %v690, %v687
        %v721 = vpack.c.b16 %v691, %v688
        %v722 = vpack.c.b16 %v692, %v689
        %v723 = vpack.c.b16 %v696, %v693
        %v724 = vpack.c.b16 %v697, %v694
        %v725 = vpack.c.b16 %v698, %v695
        %v726 = vpack.c.b16 %v702, %v699
        %v727 = vpack.c.b16 %v703, %v700
        %v728 = vpack.c.b16 %v704, %v701
        %753 = vmatprep.subr.bf16.mxu0 %v706
        %754 = vmatpush1.bf16.msra.mxu0 %v705
        %755 = vmatprep.subr.bf16.mxu0 %v709
        %756 = vmatpush1.bf16.msra.mxu0 %v708
        %757 = vmatprep.subr.bf16.mxu0 %v712
        %758 = vmatpush1.bf16.msra.mxu0 %v711
        %759 = vmatprep.subr.bf16.mxu0 %v715
        %760 = vmatpush1.bf16.msra.mxu0 %v714
        %761 = vmatprep.subr.bf16.mxu0 %v718
        %762 = vmatpush1.bf16.msra.mxu0 %v717
        %763 = vmatprep.subr.bf16.mxu0 %v721
        %764 = vmatpush1.bf16.msra.mxu0 %v720
        %765 = vmatprep.subr.bf16.mxu0 %v724
        %766 = vmatpush1.bf16.msra.mxu0 %v723
        %767 = vmatprep.subr.bf16.mxu0 %v727
        %768 = vmatpush1.bf16.msra.mxu0 %v726
        %769 = vmatprep.subr.bf16.mxu0 0
        %770 = vmatpush1.bf16.msra.mxu0 0
        %771 = vmatprep.subr.bf16.mxu0 0
        %772 = vmatpush1.bf16.msra.mxu0 0
        %773 = vmatprep.subr.bf16.mxu0 0
        %774 = vmatpush1.bf16.msra.mxu0 0
        %775 = vmatprep.subr.bf16.mxu0 0
        %776 = vmatpush1.bf16.msra.mxu0 0
        %777 = vmatprep.subr.bf16.mxu0 0
        %778 = vmatpush1.bf16.msra.mxu0 0
        %779 = vmatprep.subr.bf16.mxu0 0
        %780 = vmatpush1.bf16.msra.mxu0 0
        %781 = vmatprep.subr.bf16.mxu0 0
        %782 = vmatpush1.bf16.msra.mxu0 0
        %783 = vmatprep.subr.bf16.mxu0 0
        %784 = vmatpush1.bf16.msra.mxu0 0
        %785 = vmatprep.mubr.bf16.mxu0 0
        %786 = vmatmul.mubr.bf16.gmra.mrb[0].mxu0 %v593
        %v787 = vpop.f32.mrb[0].mxu0
        %v788 = vadd.f32 0.0, %v787
        %v789 = vpop.f32.mrb[0].mxu0
        %v790 = vadd.f32 0.0, %v789
        %v791 = vpop.f32.mrb[0].mxu0
        %v792 = vadd.f32 0.0, %v791
        %v793 = vpop.f32.mrb[0].mxu0
        %v794 = vadd.f32 0.0, %v793
        %795 = vmatprep.mubr.bf16.mxu0 0
        %796 = vmatmul.mubr.bf16.gmra.mrb[0].mxu0 %v594
        %v797 = vpop.f32.mrb[0].mxu0
        %v798 = vadd.f32 0.0, %v797
        %v799 = vpop.f32.mrb[0].mxu0
        %v800 = vadd.f32 0.0, %v799
        %v801 = vpop.f32.mrb[0].mxu0
        %v802 = vadd.f32 0.0, %v801
        %v803 = vpop.f32.mrb[0].mxu0
        %v804 = vadd.f32 0.0, %v803
        %805 = vmatprep.mubr.bf16.mxu0 0
        %806 = vmatmul.mubr.bf16.gmra.mrb[0].mxu0 %v595
        %v807 = vpop.f32.mrb[0].mxu0
        %v808 = vadd.f32 0.0, %v807
        %v809 = vpop.f32.mrb[0].mxu0
        %v810 = vadd.f32 0.0, %v809
        %v811 = vpop.f32.mrb[0].mxu0
        %v812 = vadd.f32 0.0, %v811
        %v813 = vpop.f32.mrb[0].mxu0
        %v814 = vadd.f32 0.0, %v813
        %815 = vmatprep.mubr.bf16.mxu0 0
        %816 = vmatmul.mubr.bf16.gmra.mrb[0].mxu0 %v596
        %v817 = vpop.f32.mrb[0].mxu0
        %v818 = vadd.f32 0.0, %v817
        %v819 = vpop.f32.mrb[0].mxu0
        %v820 = vadd.f32 0.0, %v819
        %v821 = vpop.f32.mrb[0].mxu0
        %v822 = vadd.f32 0.0, %v821
        %v823 = vpop.f32.mrb[0].mxu0
        %v824 = vadd.f32 0.0, %v823
        %825 = vmatprep.mubr.bf16.mxu0 0
        %826 = vmatmul.mubr.bf16.gmra.mrb[0].mxu0 %v597
        %v827 = vpop.f32.mrb[0].mxu0
        %v828 = vadd.f32 0.0, %v827
        %v829 = vpop.f32.mrb[0].mxu0
        %v830 = vadd.f32 0.0, %v829
        %v831 = vpop.f32.mrb[0].mxu0
        %v832 = vadd.f32 0.0, %v831
        %v833 = vpop.f32.mrb[0].mxu0
        %v834 = vadd.f32 0.0, %v833
        %835 = vmatprep.mubr.bf16.mxu0 0
        %836 = vmatmul.mubr.bf16.gmra.mrb[0].mxu0 %v598
        %v837 = vpop.f32.mrb[0].mxu0
        %v838 = vadd.f32 0.0, %v837
        %v839 = vpop.f32.mrb[0].mxu0
        %v840 = vadd.f32 0.0, %v839
        %v841 = vpop.f32.mrb[0].mxu0
        %v842 = vadd.f32 0.0, %v841
        %v843 = vpop.f32.mrb[0].mxu0
        %v844 = vadd.f32 0.0, %v843
        %845 = vmatprep.mubr.bf16.mxu0 0
        %846 = vmatmul.mubr.bf16.gmra.mrb[0].mxu0 %v599
        %v847 = vpop.f32.mrb[0].mxu0
        %v848 = vadd.f32 0.0, %v847
        %v849 = vpop.f32.mrb[0].mxu0
        %v850 = vadd.f32 0.0, %v849
        %v851 = vpop.f32.mrb[0].mxu0
        %v852 = vadd.f32 0.0, %v851
        %v853 = vpop.f32.mrb[0].mxu0
        %v854 = vadd.f32 0.0, %v853
        %855 = vmatprep.mubr.bf16.mxu0 0
        %856 = vmatmul.mubr.bf16.gmra.mrb[0].mxu0 %v600
        %v857 = vpop.f32.mrb[0].mxu0
        %v858 = vadd.f32 0.0, %v857
        %v859 = vpop.f32.mrb[0].mxu0
        %v860 = vadd.f32 0.0, %v859
        %v861 = vpop.f32.mrb[0].mxu0
        %v862 = vadd.f32 0.0, %v861
        %v863 = vpop.f32.mrb[0].mxu0
        %v864 = vadd.f32 0.0, %v863
        %865 = vmatprep.mubr.bf16.mxu0 0
        %866 = vmatmul.mubr.bf16.gmra.mrb[0].mxu0 %v601
        %v867 = vpop.f32.mrb[0].mxu0
        %v868 = vadd.f32 0.0, %v867
        %v869 = vpop.f32.mrb[0].mxu0
        %v870 = vadd.f32 0.0, %v869
        %v871 = vpop.f32.mrb[0].mxu0
        %v872 = vadd.f32 0.0, %v871
        %v873 = vpop.f32.mrb[0].mxu0
        %v874 = vadd.f32 0.0, %v873
        %875 = vmatprep.mubr.bf16.mxu0 0
        %876 = vmatmul.mubr.bf16.gmra.mrb[0].mxu0 %v602
        %v877 = vpop.f32.mrb[0].mxu0
        %v878 = vadd.f32 0.0, %v877
        %v879 = vpop.f32.mrb[0].mxu0
        %v880 = vadd.f32 0.0, %v879
        %v881 = vpop.f32.mrb[0].mxu0
        %v882 = vadd.f32 0.0, %v881
        %v883 = vpop.f32.mrb[0].mxu0
        %v884 = vadd.f32 0.0, %v883
        %885 = vmatprep.mubr.bf16.mxu0 0
        %886 = vmatmul.mubr.bf16.gmra.mrb[0].mxu0 %v603
        %v887 = vpop.f32.mrb[0].mxu0
        %v888 = vadd.f32 0.0, %v887
        %v889 = vpop.f32.mrb[0].mxu0
        %v890 = vadd.f32 0.0, %v889
        %v891 = vpop.f32.mrb[0].mxu0
        %v892 = vadd.f32 0.0, %v891
        %v893 = vpop.f32.mrb[0].mxu0
        %v894 = vadd.f32 0.0, %v893
        %895 = vmatprep.mubr.bf16.mxu0 0
        %896 = vmatmul.mubr.bf16.gmra.mrb[0].mxu0 %v604
        %v897 = vpop.f32.mrb[0].mxu0
        %v898 = vadd.f32 0.0, %v897
        %v899 = vpop.f32.mrb[0].mxu0
        %v900 = vadd.f32 0.0, %v899
        %v901 = vpop.f32.mrb[0].mxu0
        %v902 = vadd.f32 0.0, %v901
        %v903 = vpop.f32.mrb[0].mxu0
        %v904 = vadd.f32 0.0, %v903
        %905 = vmatprep.mubr.bf16.mxu0 0
        %906 = vmatmul.mubr.bf16.gmra.mrb[0].mxu0 %v605
        %v907 = vpop.f32.mrb[0].mxu0
        %v908 = vadd.f32 0.0, %v907
        %v909 = vpop.f32.mrb[0].mxu0
        %v910 = vadd.f32 0.0, %v909
        %v911 = vpop.f32.mrb[0].mxu0
        %v912 = vadd.f32 0.0, %v911
        %v913 = vpop.f32.mrb[0].mxu0
        %v914 = vadd.f32 0.0, %v913
        %915 = vmatprep.mubr.bf16.mxu0 0
        %916 = vmatmul.mubr.bf16.gmra.mrb[0].mxu0 %v606
        %v917 = vpop.f32.mrb[0].mxu0
        %v918 = vadd.f32 0.0, %v917
        %v919 = vpop.f32.mrb[0].mxu0
        %v920 = vadd.f32 0.0, %v919
        %v921 = vpop.f32.mrb[0].mxu0
        %v922 = vadd.f32 0.0, %v921
        %v923 = vpop.f32.mrb[0].mxu0
        %v924 = vadd.f32 0.0, %v923
        %925 = vmatprep.mubr.bf16.mxu0 0
        %926 = vmatmul.mubr.bf16.gmra.mrb[0].mxu0 %v607
        %v927 = vpop.f32.mrb[0].mxu0
        %v928 = vadd.f32 0.0, %v927
        %v929 = vpop.f32.mrb[0].mxu0
        %v930 = vadd.f32 0.0, %v929
        %v931 = vpop.f32.mrb[0].mxu0
        %v932 = vadd.f32 0.0, %v931
        %v933 = vpop.f32.mrb[0].mxu0
        %v934 = vadd.f32 0.0, %v933
        %935 = vmatprep.mubr.bf16.mxu0 0
        %936 = vmatmul.mubr.bf16.gmra.mrb[0].mxu0 %v608
        %v937 = vpop.f32.mrb[0].mxu0
        %v938 = vadd.f32 0.0, %v937
        %v939 = vpop.f32.mrb[0].mxu0
        %v940 = vadd.f32 0.0, %v939
        %v941 = vpop.f32.mrb[0].mxu0
        %v942 = vadd.f32 0.0, %v941
        %v943 = vpop.f32.mrb[0].mxu0
        %v944 = vadd.f32 0.0, %v943
        %945 = vdwg.mxu0
        %946 = vmatprep.subr.bf16.mxu0 0
        %947 = vmatpush1.bf16.msra.mxu0 %v707
        %948 = vmatprep.subr.bf16.mxu0 0
        %949 = vmatpush1.bf16.msra.mxu0 %v710
        %950 = vmatprep.subr.bf16.mxu0 0
        %951 = vmatpush1.bf16.msra.mxu0 %v713
        %952 = vmatprep.subr.bf16.mxu0 0
        %953 = vmatpush1.bf16.msra.mxu0 %v716
        %954 = vmatprep.subr.bf16.mxu0 0
        %955 = vmatpush1.bf16.msra.mxu0 %v719
        %956 = vmatprep.subr.bf16.mxu0 0
        %957 = vmatpush1.bf16.msra.mxu0 %v722
        %958 = vmatprep.subr.bf16.mxu0 0
        %959 = vmatpush1.bf16.msra.mxu0 %v725
        %960 = vmatprep.subr.bf16.mxu0 0
        %961 = vmatpush1.bf16.msra.mxu0 %v728
        %962 = vmatprep.subr.bf16.mxu0 0
        %963 = vmatpush1.bf16.msra.mxu0 0
        %964 = vmatprep.subr.bf16.mxu0 0
        %965 = vmatpush1.bf16.msra.mxu0 0
        %966 = vmatprep.subr.bf16.mxu0 0
        %967 = vmatpush1.bf16.msra.mxu0 0
        %968 = vmatprep.subr.bf16.mxu0 0
        %969 = vmatpush1.bf16.msra.mxu0 0
        %970 = vmatprep.subr.bf16.mxu0 0
        %971 = vmatpush1.bf16.msra.mxu0 0
        %972 = vmatprep.subr.bf16.mxu0 0
        %973 = vmatpush1.bf16.msra.mxu0 0
        %974 = vmatprep.subr.bf16.mxu0 0
        %975 = vmatpush1.bf16.msra.mxu0 0
        %976 = vmatprep.subr.bf16.mxu0 0
        %977 = vmatpush1.bf16.msra.mxu0 0
        %978 = vmatprep.mubr.bf16.mxu0 0
        %979 = vmatmul.mubr.bf16.gmra.mrb[0].mxu0 %v593
        %v980 = vpop.f32.mrb[0].mxu0
        %v981 = vadd.f32 0.0, %v980
        %v982 = vpop.f32.mrb[0].mxu0
        %v983 = vpop.f32.mrb[0].mxu0
        %v984 = vadd.f32 0.0, %v983
        %v985 = vpop.f32.mrb[0].mxu0
        %986 = vmatprep.mubr.bf16.mxu0 0
        %987 = vmatmul.mubr.bf16.gmra.mrb[0].mxu0 %v594
        %v988 = vpop.f32.mrb[0].mxu0
        %v989 = vadd.f32 0.0, %v988
        %v990 = vpop.f32.mrb[0].mxu0
        %v991 = vpop.f32.mrb[0].mxu0
        %v992 = vadd.f32 0.0, %v991
        %v993 = vpop.f32.mrb[0].mxu0
        %994 = vmatprep.mubr.bf16.mxu0 0
        %995 = vmatmul.mubr.bf16.gmra.mrb[0].mxu0 %v595
        %v996 = vpop.f32.mrb[0].mxu0
        %v997 = vadd.f32 0.0, %v996
        %v998 = vpop.f32.mrb[0].mxu0
        %v999 = vpop.f32.mrb[0].mxu0
        %v1000 = vadd.f32 0.0, %v999
        %v1001 = vpop.f32.mrb[0].mxu0
        %1002 = vmatprep.mubr.bf16.mxu0 0
        %1003 = vmatmul.mubr.bf16.gmra.mrb[0].mxu0 %v596
        %v1004 = vpop.f32.mrb[0].mxu0
        %v1005 = vadd.f32 0.0, %v1004
        %v1006 = vpop.f32.mrb[0].mxu0
        %v1007 = vpop.f32.mrb[0].mxu0
        %v1008 = vadd.f32 0.0, %v1007
        %v1009 = vpop.f32.mrb[0].mxu0
        %1010 = vmatprep.mubr.bf16.mxu0 0
        %1011 = vmatmul.mubr.bf16.gmra.mrb[0].mxu0 %v597
        %v1012 = vpop.f32.mrb[0].mxu0
        %v1013 = vadd.f32 0.0, %v1012
        %v1014 = vpop.f32.mrb[0].mxu0
        %v1015 = vpop.f32.mrb[0].mxu0
        %v1016 = vadd.f32 0.0, %v1015
        %v1017 = vpop.f32.mrb[0].mxu0
        %1018 = vmatprep.mubr.bf16.mxu0 0
        %1019 = vmatmul.mubr.bf16.gmra.mrb[0].mxu0 %v598
        %v1020 = vpop.f32.mrb[0].mxu0
        %v1021 = vadd.f32 0.0, %v1020
        %v1022 = vpop.f32.mrb[0].mxu0
        %v1023 = vpop.f32.mrb[0].mxu0
        %v1024 = vadd.f32 0.0, %v1023
        %v1025 = vpop.f32.mrb[0].mxu0
        %1026 = vmatprep.mubr.bf16.mxu0 0
        %1027 = vmatmul.mubr.bf16.gmra.mrb[0].mxu0 %v599
        %v1028 = vpop.f32.mrb[0].mxu0
        %v1029 = vadd.f32 0.0, %v1028
        %v1030 = vpop.f32.mrb[0].mxu0
        %v1031 = vpop.f32.mrb[0].mxu0
        %v1032 = vadd.f32 0.0, %v1031
        %v1033 = vpop.f32.mrb[0].mxu0
        %1034 = vmatprep.mubr.bf16.mxu0 0
        %1035 = vmatmul.mubr.bf16.gmra.mrb[0].mxu0 %v600
        %v1036 = vpop.f32.mrb[0].mxu0
        %v1037 = vadd.f32 0.0, %v1036
        %v1038 = vpop.f32.mrb[0].mxu0
        %v1039 = vpop.f32.mrb[0].mxu0
        %v1040 = vadd.f32 0.0, %v1039
        %v1041 = vpop.f32.mrb[0].mxu0
        %1042 = vmatprep.mubr.bf16.mxu0 0
        %1043 = vmatmul.mubr.bf16.gmra.mrb[0].mxu0 %v601
        %v1044 = vpop.f32.mrb[0].mxu0
        %v1045 = vadd.f32 0.0, %v1044
        %v1046 = vpop.f32.mrb[0].mxu0
        %v1047 = vpop.f32.mrb[0].mxu0
        %v1048 = vadd.f32 0.0, %v1047
        %v1049 = vpop.f32.mrb[0].mxu0
        %1050 = vmatprep.mubr.bf16.mxu0 0
        %1051 = vmatmul.mubr.bf16.gmra.mrb[0].mxu0 %v602
        %v1052 = vpop.f32.mrb[0].mxu0
        %v1053 = vadd.f32 0.0, %v1052
        %v1054 = vpop.f32.mrb[0].mxu0
        %v1055 = vpop.f32.mrb[0].mxu0
        %v1056 = vadd.f32 0.0, %v1055
        %v1057 = vpop.f32.mrb[0].mxu0
        %1058 = vmatprep.mubr.bf16.mxu0 0
        %1059 = vmatmul.mubr.bf16.gmra.mrb[0].mxu0 %v603
        %v1060 = vpop.f32.mrb[0].mxu0
        %v1061 = vadd.f32 0.0, %v1060
        %v1062 = vpop.f32.mrb[0].mxu0
        %v1063 = vpop.f32.mrb[0].mxu0
        %v1064 = vadd.f32 0.0, %v1063
        %v1065 = vpop.f32.mrb[0].mxu0
        %1066 = vmatprep.mubr.bf16.mxu0 0
        %1067 = vmatmul.mubr.bf16.gmra.mrb[0].mxu0 %v604
        %v1068 = vpop.f32.mrb[0].mxu0
        %v1069 = vadd.f32 0.0, %v1068
        %v1070 = vpop.f32.mrb[0].mxu0
        %v1071 = vpop.f32.mrb[0].mxu0
        %v1072 = vadd.f32 0.0, %v1071
        %v1073 = vpop.f32.mrb[0].mxu0
        %1074 = vmatprep.mubr.bf16.mxu0 0
        %1075 = vmatmul.mubr.bf16.gmra.mrb[0].mxu0 %v605
        %v1076 = vpop.f32.mrb[0].mxu0
        %v1077 = vadd.f32 0.0, %v1076
        %v1078 = vpop.f32.mrb[0].mxu0
        %v1079 = vpop.f32.mrb[0].mxu0
        %v1080 = vadd.f32 0.0, %v1079
        %v1081 = vpop.f32.mrb[0].mxu0
        %1082 = vmatprep.mubr.bf16.mxu0 0
        %1083 = vmatmul.mubr.bf16.gmra.mrb[0].mxu0 %v606
        %v1084 = vpop.f32.mrb[0].mxu0
        %v1085 = vadd.f32 0.0, %v1084
        %v1086 = vpop.f32.mrb[0].mxu0
        %v1087 = vpop.f32.mrb[0].mxu0
        %v1088 = vadd.f32 0.0, %v1087
        %v1089 = vpop.f32.mrb[0].mxu0
        %1090 = vmatprep.mubr.bf16.mxu0 0
        %1091 = vmatmul.mubr.bf16.gmra.mrb[0].mxu0 %v607
        %v1092 = vpop.f32.mrb[0].mxu0
        %v1093 = vadd.f32 0.0, %v1092
        %v1094 = vpop.f32.mrb[0].mxu0
        %v1095 = vpop.f32.mrb[0].mxu0
        %v1096 = vadd.f32 0.0, %v1095
        %v1097 = vpop.f32.mrb[0].mxu0
        %1098 = vmatprep.mubr.bf16.mxu0 0
        %1099 = vmatmul.mubr.bf16.gmra.mrb[0].mxu0 %v608
        %v1100 = vpop.f32.mrb[0].mxu0
        %v1101 = vadd.f32 0.0, %v1100
        %v1102 = vpop.f32.mrb[0].mxu0
        %v1103 = vpop.f32.mrb[0].mxu0
        %v1104 = vadd.f32 0.0, %v1103
        %v1105 = vpop.f32.mrb[0].mxu0
        %1106 = vdwg.mxu0
        %v1107 = vadd.f32 %v369, %v788
        %v1108 = vadd.f32 %v370, %v790
        %v1109 = vadd.f32 %v371, %v981
        %v1110 = vadd.f32 %v372, %v792
        %v1111 = vadd.f32 %v373, %v794
        %v1112 = vadd.f32 %v374, %v984
        %v1113 = vadd.f32 %v375, %v798
        %v1114 = vadd.f32 %v376, %v800
        %v1115 = vadd.f32 %v377, %v989
        %v1116 = vadd.f32 %v378, %v802
        %v1117 = vadd.f32 %v379, %v804
        %v1118 = vadd.f32 %v380, %v992
        %v1119 = vadd.f32 %v381, %v808
        %v1120 = vadd.f32 %v382, %v810
        %v1121 = vadd.f32 %v383, %v997
        %v1122 = vadd.f32 %v384, %v812
        %v1123 = vadd.f32 %v385, %v814
        %v1124 = vadd.f32 %v386, %v1000
        %v1125 = vadd.f32 %v387, %v818
        %v1126 = vadd.f32 %v388, %v820
        %v1127 = vadd.f32 %v389, %v1005
        %v1128 = vadd.f32 %v390, %v822
        %v1129 = vadd.f32 %v391, %v824
        %v1130 = vadd.f32 %v392, %v1008
        %v1131 = vadd.f32 %v393, %v828
        %v1132 = vadd.f32 %v394, %v830
        %v1133 = vadd.f32 %v395, %v1013
        %v1134 = vadd.f32 %v396, %v832
        %v1135 = vadd.f32 %v397, %v834
        %v1136 = vadd.f32 %v398, %v1016
        %v1137 = vadd.f32 %v399, %v838
        %v1138 = vadd.f32 %v400, %v840
        %v1139 = vadd.f32 %v401, %v1021
        %v1140 = vadd.f32 %v402, %v842
        %v1141 = vadd.f32 %v403, %v844
        %v1142 = vadd.f32 %v404, %v1024
        %v1143 = vadd.f32 %v405, %v848
        %v1144 = vadd.f32 %v406, %v850
        %v1145 = vadd.f32 %v407, %v1029
        %v1146 = vadd.f32 %v408, %v852
        %v1147 = vadd.f32 %v409, %v854
        %v1148 = vadd.f32 %v410, %v1032
        %v1149 = vadd.f32 %v411, %v858
        %v1150 = vadd.f32 %v412, %v860
        %v1151 = vadd.f32 %v413, %v1037
        %v1152 = vadd.f32 %v414, %v862
        %v1153 = vadd.f32 %v415, %v864
        %v1154 = vadd.f32 %v416, %v1040
        %v1155 = vadd.f32 %v417, %v868
        %v1156 = vadd.f32 %v418, %v870
        %v1157 = vadd.f32 %v419, %v1045
        %v1158 = vadd.f32 %v420, %v872
        %v1159 = vadd.f32 %v421, %v874
        %v1160 = vadd.f32 %v422, %v1048
        %v1161 = vadd.f32 %v423, %v878
        %v1162 = vadd.f32 %v424, %v880
        %v1163 = vadd.f32 %v425, %v1053
        %v1164 = vadd.f32 %v426, %v882
        %v1165 = vadd.f32 %v427, %v884
        %v1166 = vadd.f32 %v428, %v1056
        %v1167 = vadd.f32 %v429, %v888
        %v1168 = vadd.f32 %v430, %v890
        %v1169 = vadd.f32 %v431, %v1061
        %v1170 = vadd.f32 %v432, %v892
        %v1171 = vadd.f32 %v433, %v894
        %v1172 = vadd.f32 %v434, %v1064
        %v1173 = vadd.f32 %v435, %v898
        %v1174 = vadd.f32 %v436, %v900
        %v1175 = vadd.f32 %v437, %v1069
        %v1176 = vadd.f32 %v438, %v902
        %v1177 = vadd.f32 %v439, %v904
        %v1178 = vadd.f32 %v440, %v1072
        %v1179 = vadd.f32 %v441, %v908
        %v1180 = vadd.f32 %v442, %v910
        %v1181 = vadd.f32 %v443, %v1077
        %v1182 = vadd.f32 %v444, %v912
        %v1183 = vadd.f32 %v445, %v914
        %v1184 = vadd.f32 %v446, %v1080
        %v1185 = vadd.f32 %v447, %v918
        %v1186 = vadd.f32 %v448, %v920
        %v1187 = vadd.f32 %v449, %v1085
        %v1188 = vadd.f32 %v450, %v922
        %v1189 = vadd.f32 %v451, %v924
        %v1190 = vadd.f32 %v452, %v1088
        %v1191 = vadd.f32 %v453, %v928
        %v1192 = vadd.f32 %v454, %v930
        %v1193 = vadd.f32 %v455, %v1093
        %v1194 = vadd.f32 %v456, %v932
        %v1195 = vadd.f32 %v457, %v934
        %v1196 = vadd.f32 %v458, %v1096
        %v1197 = vadd.f32 %v459, %v938
        %v1198 = vadd.f32 %v460, %v940
        %v1199 = vadd.f32 %v461, %v1101
        %v1200 = vadd.f32 %v462, %v942
        %v1201 = vadd.f32 %v463, %v944
        %v1202 = vadd.f32 %v464, %v1104
        %1203 = vst [vmem:[#allocation2] sm:$0xff] %v1107
        %1204 = vst [vmem:[#allocation2 + $0x8] sm:$0xff] %v1108
        %vm1205 = vcmask 523264
        %1206 = vst.msk [vmem:[#allocation2 + $0x10] sm:$0xff] %vm1205, %v1109
        %1207 = vst [vmem:[#allocation2 + $0x18] sm:$0xff] %v1110
        %1208 = vst [vmem:[#allocation2 + $0x20] sm:$0xff] %v1111
        %1209 = vst.msk [vmem:[#allocation2 + $0x28] sm:$0xff] %vm1205, %v1112
        %1210 = vst [vmem:[#allocation2 + $0x30] sm:$0xff] %v1113
        %1211 = vst [vmem:[#allocation2 + $0x38] sm:$0xff] %v1114
        %1212 = vst.msk [vmem:[#allocation2 + $0x40] sm:$0xff] %vm1205, %v1115
        %1213 = vst [vmem:[#allocation2 + $0x48] sm:$0xff] %v1116
        %1214 = vst [vmem:[#allocation2 + $0x50] sm:$0xff] %v1117
        %1215 = vst.msk [vmem:[#allocation2 + $0x58] sm:$0xff] %vm1205, %v1118
        %1216 = vst [vmem:[#allocation2 + $0x60] sm:$0xff] %v1119
        %1217 = vst [vmem:[#allocation2 + $0x68] sm:$0xff] %v1120
        %1218 = vst.msk [vmem:[#allocation2 + $0x70] sm:$0xff] %vm1205, %v1121
        %1219 = vst [vmem:[#allocation2 + $0x78] sm:$0xff] %v1122
        %1220 = vst [vmem:[#allocation2 + $0x80] sm:$0xff] %v1123
        %1221 = vst.msk [vmem:[#allocation2 + $0x88] sm:$0xff] %vm1205, %v1124
        %1222 = vst [vmem:[#allocation2 + $0x90] sm:$0xff] %v1125
        %1223 = vst [vmem:[#allocation2 + $0x98] sm:$0xff] %v1126
        %1224 = vst.msk [vmem:[#allocation2 + $0xa0] sm:$0xff] %vm1205, %v1127
        %1225 = vst [vmem:[#allocation2 + $0xa8] sm:$0xff] %v1128
        %1226 = vst [vmem:[#allocation2 + $0xb0] sm:$0xff] %v1129
        %1227 = vst.msk [vmem:[#allocation2 + $0xb8] sm:$0xff] %vm1205, %v1130
        %1228 = vst [vmem:[#allocation2 + $0xc0] sm:$0xff] %v1131
        %1229 = vst [vmem:[#allocation2 + $0xc8] sm:$0xff] %v1132
        %1230 = vst.msk [vmem:[#allocation2 + $0xd0] sm:$0xff] %vm1205, %v1133
        %1231 = vst [vmem:[#allocation2 + $0xd8] sm:$0xff] %v1134
        %1232 = vst [vmem:[#allocation2 + $0xe0] sm:$0xff] %v1135
        %1233 = vst.msk [vmem:[#allocation2 + $0xe8] sm:$0xff] %vm1205, %v1136
        %1234 = vst [vmem:[#allocation2 + $0xf0] sm:$0xff] %v1137
        %1235 = vst [vmem:[#allocation2 + $0xf8] sm:$0xff] %v1138
        %1236 = vst.msk [vmem:[#allocation2 + $0x100] sm:$0xff] %vm1205, %v1139
        %1237 = vst [vmem:[#allocation2 + $0x108] sm:$0xff] %v1140
        %1238 = vst [vmem:[#allocation2 + $0x110] sm:$0xff] %v1141
        %1239 = vst.msk [vmem:[#allocation2 + $0x118] sm:$0xff] %vm1205, %v1142
        %1240 = vst [vmem:[#allocation2 + $0x120] sm:$0xff] %v1143
        %1241 = vst [vmem:[#allocation2 + $0x128] sm:$0xff] %v1144
        %1242 = vst.msk [vmem:[#allocation2 + $0x130] sm:$0xff] %vm1205, %v1145
        %1243 = vst [vmem:[#allocation2 + $0x138] sm:$0xff] %v1146
        %1244 = vst [vmem:[#allocation2 + $0x140] sm:$0xff] %v1147
        %1245 = vst.msk [vmem:[#allocation2 + $0x148] sm:$0xff] %vm1205, %v1148
        %1246 = vst [vmem:[#allocation2 + $0x150] sm:$0xff] %v1149
        %1247 = vst [vmem:[#allocation2 + $0x158] sm:$0xff] %v1150
        %1248 = vst.msk [vmem:[#allocation2 + $0x160] sm:$0xff] %vm1205, %v1151
        %1249 = vst [vmem:[#allocation2 + $0x168] sm:$0xff] %v1152
        %1250 = vst [vmem:[#allocation2 + $0x170] sm:$0xff] %v1153
        %1251 = vst.msk [vmem:[#allocation2 + $0x178] sm:$0xff] %vm1205, %v1154
        %1252 = vst [vmem:[#allocation2 + $0x180] sm:$0xff] %v1155
        %1253 = vst [vmem:[#allocation2 + $0x188] sm:$0xff] %v1156
        %1254 = vst.msk [vmem:[#allocation2 + $0x190] sm:$0xff] %vm1205, %v1157
        %1255 = vst [vmem:[#allocation2 + $0x198] sm:$0xff] %v1158
        %1256 = vst [vmem:[#allocation2 + $0x1a0] sm:$0xff] %v1159
        %1257 = vst.msk [vmem:[#allocation2 + $0x1a8] sm:$0xff] %vm1205, %v1160
        %1258 = vst [vmem:[#allocation2 + $0x1b0] sm:$0xff] %v1161
        %1259 = vst [vmem:[#allocation2 + $0x1b8] sm:$0xff] %v1162
        %1260 = vst.msk [vmem:[#allocation2 + $0x1c0] sm:$0xff] %vm1205, %v1163
        %1261 = vst [vmem:[#allocation2 + $0x1c8] sm:$0xff] %v1164
        %1262 = vst [vmem:[#allocation2 + $0x1d0] sm:$0xff] %v1165
        %1263 = vst.msk [vmem:[#allocation2 + $0x1d8] sm:$0xff] %vm1205, %v1166
        %1264 = vst [vmem:[#allocation2 + $0x1e0] sm:$0xff] %v1167
        %1265 = vst [vmem:[#allocation2 + $0x1e8] sm:$0xff] %v1168
        %1266 = vst.msk [vmem:[#allocation2 + $0x1f0] sm:$0xff] %vm1205, %v1169
        %1267 = vst [vmem:[#allocation2 + $0x1f8] sm:$0xff] %v1170
        %1268 = vst [vmem:[#allocation2 + $0x200] sm:$0xff] %v1171
        %1269 = vst.msk [vmem:[#allocation2 + $0x208] sm:$0xff] %vm1205, %v1172
        %1270 = vst [vmem:[#allocation2 + $0x210] sm:$0xff] %v1173
        %1271 = vst [vmem:[#allocation2 + $0x218] sm:$0xff] %v1174
        %1272 = vst.msk [vmem:[#allocation2 + $0x220] sm:$0xff] %vm1205, %v1175
        %1273 = vst [vmem:[#allocation2 + $0x228] sm:$0xff] %v1176
        %1274 = vst [vmem:[#allocation2 + $0x230] sm:$0xff] %v1177
        %1275 = vst.msk [vmem:[#allocation2 + $0x238] sm:$0xff] %vm1205, %v1178
        %1276 = vst [vmem:[#allocation2 + $0x240] sm:$0xff] %v1179
        %1277 = vst [vmem:[#allocation2 + $0x248] sm:$0xff] %v1180
        %1278 = vst.msk [vmem:[#allocation2 + $0x250] sm:$0xff] %vm1205, %v1181
        %1279 = vst [vmem:[#allocation2 + $0x258] sm:$0xff] %v1182
        %1280 = vst [vmem:[#allocation2 + $0x260] sm:$0xff] %v1183
        %1281 = vst.msk [vmem:[#allocation2 + $0x268] sm:$0xff] %vm1205, %v1184
        %1282 = vst [vmem:[#allocation2 + $0x270] sm:$0xff] %v1185
        %1283 = vst [vmem:[#allocation2 + $0x278] sm:$0xff] %v1186
        %1284 = vst.msk [vmem:[#allocation2 + $0x280] sm:$0xff] %vm1205, %v1187
        %1285 = vst [vmem:[#allocation2 + $0x288] sm:$0xff] %v1188
        %1286 = vst [vmem:[#allocation2 + $0x290] sm:$0xff] %v1189
        %1287 = vst.msk [vmem:[#allocation2 + $0x298] sm:$0xff] %vm1205, %v1190
        %1288 = vst [vmem:[#allocation2 + $0x2a0] sm:$0xff] %v1191
        %1289 = vst [vmem:[#allocation2 + $0x2a8] sm:$0xff] %v1192
        %1290 = vst.msk [vmem:[#allocation2 + $0x2b0] sm:$0xff] %vm1205, %v1193
        %1291 = vst [vmem:[#allocation2 + $0x2b8] sm:$0xff] %v1194
        %1292 = vst [vmem:[#allocation2 + $0x2c0] sm:$0xff] %v1195
        %1293 = vst.msk [vmem:[#allocation2 + $0x2c8] sm:$0xff] %vm1205, %v1196
        %1294 = vst [vmem:[#allocation2 + $0x2d0] sm:$0xff] %v1197
        %1295 = vst [vmem:[#allocation2 + $0x2d8] sm:$0xff] %v1198
        %1296 = vst.msk [vmem:[#allocation2 + $0x2e0] sm:$0xff] %vm1205, %v1199
        %1297 = vst [vmem:[#allocation2 + $0x2e8] sm:$0xff] %v1200
        %1298 = vst [vmem:[#allocation2 + $0x2f0] sm:$0xff] %v1201
        %1299 = vst.msk [vmem:[#allocation2 + $0x2f8] sm:$0xff] %vm1205, %v1202
        // Predicated region
        $region49: #{conv2d.1} parent=31 // pred_check
          %p1300 = pneg %p268
        $region50: #{conv2d.1} parent=31 // pred_check_branch
          %1302 = sbr.rel (%p1300) target = $region52
        $region51: #{conv2d.1} parent=31 // pred_region
          %v1303 = vld [vmem:[#allocation2] sm:$0xff]
          %v1304 = vld [vmem:[#allocation2 + $0x8] sm:$0xff]
          %v1305 = vld [vmem:[#allocation2 + $0x10] sm:$0xff]
          %v1306 = vld [vmem:[#allocation2 + $0x18] sm:$0xff]
          %v1307 = vld [vmem:[#allocation2 + $0x20] sm:$0xff]
          %v1308 = vld [vmem:[#allocation2 + $0x28] sm:$0xff]
          %v1309 = vld [vmem:[#allocation2 + $0x30] sm:$0xff]
          %v1310 = vld [vmem:[#allocation2 + $0x38] sm:$0xff]
          %v1311 = vld [vmem:[#allocation2 + $0x40] sm:$0xff]
          %v1312 = vld [vmem:[#allocation2 + $0x48] sm:$0xff]
          %v1313 = vld [vmem:[#allocation2 + $0x50] sm:$0xff]
          %v1314 = vld [vmem:[#allocation2 + $0x58] sm:$0xff]
          %v1315 = vld [vmem:[#allocation2 + $0x60] sm:$0xff]
          %v1316 = vld [vmem:[#allocation2 + $0x68] sm:$0xff]
          %v1317 = vld [vmem:[#allocation2 + $0x70] sm:$0xff]
          %v1318 = vld [vmem:[#allocation2 + $0x78] sm:$0xff]
          %v1319 = vld [vmem:[#allocation2 + $0x80] sm:$0xff]
          %v1320 = vld [vmem:[#allocation2 + $0x88] sm:$0xff]
          %v1321 = vld [vmem:[#allocation2 + $0x90] sm:$0xff]
          %v1322 = vld [vmem:[#allocation2 + $0x98] sm:$0xff]
          %v1323 = vld [vmem:[#allocation2 + $0xa0] sm:$0xff]
          %v1324 = vld [vmem:[#allocation2 + $0xa8] sm:$0xff]
          %v1325 = vld [vmem:[#allocation2 + $0xb0] sm:$0xff]
          %v1326 = vld [vmem:[#allocation2 + $0xb8] sm:$0xff]
          %v1327 = vld [vmem:[#allocation2 + $0xc0] sm:$0xff]
          %v1328 = vld [vmem:[#allocation2 + $0xc8] sm:$0xff]
          %v1329 = vld [vmem:[#allocation2 + $0xd0] sm:$0xff]
          %v1330 = vld [vmem:[#allocation2 + $0xd8] sm:$0xff]
          %v1331 = vld [vmem:[#allocation2 + $0xe0] sm:$0xff]
          %v1332 = vld [vmem:[#allocation2 + $0xe8] sm:$0xff]
          %v1333 = vld [vmem:[#allocation2 + $0xf0] sm:$0xff]
          %v1334 = vld [vmem:[#allocation2 + $0xf8] sm:$0xff]
          %v1335 = vld [vmem:[#allocation2 + $0x100] sm:$0xff]
          %v1336 = vld [vmem:[#allocation2 + $0x108] sm:$0xff]
          %v1337 = vld [vmem:[#allocation2 + $0x110] sm:$0xff]
          %v1338 = vld [vmem:[#allocation2 + $0x118] sm:$0xff]
          %v1339 = vld [vmem:[#allocation2 + $0x120] sm:$0xff]
          %v1340 = vld [vmem:[#allocation2 + $0x128] sm:$0xff]
          %v1341 = vld [vmem:[#allocation2 + $0x130] sm:$0xff]
          %v1342 = vld [vmem:[#allocation2 + $0x138] sm:$0xff]
          %v1343 = vld [vmem:[#allocation2 + $0x140] sm:$0xff]
          %v1344 = vld [vmem:[#allocation2 + $0x148] sm:$0xff]
          %v1345 = vld [vmem:[#allocation2 + $0x150] sm:$0xff]
          %v1346 = vld [vmem:[#allocation2 + $0x158] sm:$0xff]
          %v1347 = vld [vmem:[#allocation2 + $0x160] sm:$0xff]
          %v1348 = vld [vmem:[#allocation2 + $0x168] sm:$0xff]
          %v1349 = vld [vmem:[#allocation2 + $0x170] sm:$0xff]
          %v1350 = vld [vmem:[#allocation2 + $0x178] sm:$0xff]
          %v1351 = vld [vmem:[#allocation2 + $0x180] sm:$0xff]
          %v1352 = vld [vmem:[#allocation2 + $0x188] sm:$0xff]
          %v1353 = vld [vmem:[#allocation2 + $0x190] sm:$0xff]
          %v1354 = vld [vmem:[#allocation2 + $0x198] sm:$0xff]
          %v1355 = vld [vmem:[#allocation2 + $0x1a0] sm:$0xff]
          %v1356 = vld [vmem:[#allocation2 + $0x1a8] sm:$0xff]
          %v1357 = vld [vmem:[#allocation2 + $0x1b0] sm:$0xff]
          %v1358 = vld [vmem:[#allocation2 + $0x1b8] sm:$0xff]
          %v1359 = vld [vmem:[#allocation2 + $0x1c0] sm:$0xff]
          %v1360 = vld [vmem:[#allocation2 + $0x1c8] sm:$0xff]
          %v1361 = vld [vmem:[#allocation2 + $0x1d0] sm:$0xff]
          %v1362 = vld [vmem:[#allocation2 + $0x1d8] sm:$0xff]
          %v1363 = vld [vmem:[#allocation2 + $0x1e0] sm:$0xff]
          %v1364 = vld [vmem:[#allocation2 + $0x1e8] sm:$0xff]
          %v1365 = vld [vmem:[#allocation2 + $0x1f0] sm:$0xff]
          %v1366 = vld [vmem:[#allocation2 + $0x1f8] sm:$0xff]
          %v1367 = vld [vmem:[#allocation2 + $0x200] sm:$0xff]
          %v1368 = vld [vmem:[#allocation2 + $0x208] sm:$0xff]
          %v1369 = vld [vmem:[#allocation2 + $0x210] sm:$0xff]
          %v1370 = vld [vmem:[#allocation2 + $0x218] sm:$0xff]
          %v1371 = vld [vmem:[#allocation2 + $0x220] sm:$0xff]
          %v1372 = vld [vmem:[#allocation2 + $0x228] sm:$0xff]
          %v1373 = vld [vmem:[#allocation2 + $0x230] sm:$0xff]
          %v1374 = vld [vmem:[#allocation2 + $0x238] sm:$0xff]
          %v1375 = vld [vmem:[#allocation2 + $0x240] sm:$0xff]
          %v1376 = vld [vmem:[#allocation2 + $0x248] sm:$0xff]
          %v1377 = vld [vmem:[#allocation2 + $0x250] sm:$0xff]
          %v1378 = vld [vmem:[#allocation2 + $0x258] sm:$0xff]
          %v1379 = vld [vmem:[#allocation2 + $0x260] sm:$0xff]
          %v1380 = vld [vmem:[#allocation2 + $0x268] sm:$0xff]
          %v1381 = vld [vmem:[#allocation2 + $0x270] sm:$0xff]
          %v1382 = vld [vmem:[#allocation2 + $0x278] sm:$0xff]
          %v1383 = vld [vmem:[#allocation2 + $0x280] sm:$0xff]
          %v1384 = vld [vmem:[#allocation2 + $0x288] sm:$0xff]
          %v1385 = vld [vmem:[#allocation2 + $0x290] sm:$0xff]
          %v1386 = vld [vmem:[#allocation2 + $0x298] sm:$0xff]
          %v1387 = vld [vmem:[#allocation2 + $0x2a0] sm:$0xff]
          %v1388 = vld [vmem:[#allocation2 + $0x2a8] sm:$0xff]
          %v1389 = vld [vmem:[#allocation2 + $0x2b0] sm:$0xff]
          %v1390 = vld [vmem:[#allocation2 + $0x2b8] sm:$0xff]
          %v1391 = vld [vmem:[#allocation2 + $0x2c0] sm:$0xff]
          %v1392 = vld [vmem:[#allocation2 + $0x2c8] sm:$0xff]
          %v1393 = vld [vmem:[#allocation2 + $0x2d0] sm:$0xff]
          %v1394 = vld [vmem:[#allocation2 + $0x2d8] sm:$0xff]
          %v1395 = vld [vmem:[#allocation2 + $0x2e0] sm:$0xff]
          %v1396 = vld [vmem:[#allocation2 + $0x2e8] sm:$0xff]
          %v1397 = vld [vmem:[#allocation2 + $0x2f0] sm:$0xff]
          %v1398 = vld [vmem:[#allocation2 + $0x2f8] sm:$0xff]
          %v1399 = vld [vmem:[#allocation8] sm:$0x7]
          %v1401 = vlaneseq
          %v1402 = vshrl.u32 %v1401, 7
          %v1403 = vsub.s32 0, %v1402
          %v1404 = vrot.slane %v1399, %v1403
          %v1405 = vlaneseq
          %v1406 = vshrl.u32 %v1405, 7
          %v1407 = vsub.s32 1, %v1406
          %v1408 = vrot.slane %v1399, %v1407
          %v1409 = vlaneseq
          %v1410 = vshrl.u32 %v1409, 7
          %v1411 = vsub.s32 2, %v1410
          %v1412 = vrot.slane %v1399, %v1411
          %v1416 = vadd.f32 %v1303, %v1404
          %v1417 = vadd.f32 %v1304, %v1408
          %v1418 = vadd.f32 %v1305, %v1412
          %v1419 = vadd.f32 %v1306, %v1404
          %v1420 = vadd.f32 %v1307, %v1408
          %v1421 = vadd.f32 %v1308, %v1412
          %v1422 = vadd.f32 %v1309, %v1404
          %v1423 = vadd.f32 %v1310, %v1408
          %v1424 = vadd.f32 %v1311, %v1412
          %v1425 = vadd.f32 %v1312, %v1404
          %v1426 = vadd.f32 %v1313, %v1408
          %v1427 = vadd.f32 %v1314, %v1412
          %v1428 = vadd.f32 %v1315, %v1404
          %v1429 = vadd.f32 %v1316, %v1408
          %v1430 = vadd.f32 %v1317, %v1412
          %v1431 = vadd.f32 %v1318, %v1404
          %v1432 = vadd.f32 %v1319, %v1408
          %v1433 = vadd.f32 %v1320, %v1412
          %v1434 = vadd.f32 %v1321, %v1404
          %v1435 = vadd.f32 %v1322, %v1408
          %v1436 = vadd.f32 %v1323, %v1412
          %v1437 = vadd.f32 %v1324, %v1404
          %v1438 = vadd.f32 %v1325, %v1408
          %v1439 = vadd.f32 %v1326, %v1412
          %v1440 = vadd.f32 %v1327, %v1404
          %v1441 = vadd.f32 %v1328, %v1408
          %v1442 = vadd.f32 %v1329, %v1412
          %v1443 = vadd.f32 %v1330, %v1404
          %v1444 = vadd.f32 %v1331, %v1408
          %v1445 = vadd.f32 %v1332, %v1412
          %v1446 = vadd.f32 %v1333, %v1404
          %v1447 = vadd.f32 %v1334, %v1408
          %v1448 = vadd.f32 %v1335, %v1412
          %v1449 = vadd.f32 %v1336, %v1404
          %v1450 = vadd.f32 %v1337, %v1408
          %v1451 = vadd.f32 %v1338, %v1412
          %v1452 = vadd.f32 %v1339, %v1404
          %v1453 = vadd.f32 %v1340, %v1408
          %v1454 = vadd.f32 %v1341, %v1412
          %v1455 = vadd.f32 %v1342, %v1404
          %v1456 = vadd.f32 %v1343, %v1408
          %v1457 = vadd.f32 %v1344, %v1412
          %v1458 = vadd.f32 %v1345, %v1404
          %v1459 = vadd.f32 %v1346, %v1408
          %v1460 = vadd.f32 %v1347, %v1412
          %v1461 = vadd.f32 %v1348, %v1404
          %v1462 = vadd.f32 %v1349, %v1408
          %v1463 = vadd.f32 %v1350, %v1412
          %v1464 = vadd.f32 %v1351, %v1404
          %v1465 = vadd.f32 %v1352, %v1408
          %v1466 = vadd.f32 %v1353, %v1412
          %v1467 = vadd.f32 %v1354, %v1404
          %v1468 = vadd.f32 %v1355, %v1408
          %v1469 = vadd.f32 %v1356, %v1412
          %v1470 = vadd.f32 %v1357, %v1404
          %v1471 = vadd.f32 %v1358, %v1408
          %v1472 = vadd.f32 %v1359, %v1412
          %v1473 = vadd.f32 %v1360, %v1404
          %v1474 = vadd.f32 %v1361, %v1408
          %v1475 = vadd.f32 %v1362, %v1412
          %v1476 = vadd.f32 %v1363, %v1404
          %v1477 = vadd.f32 %v1364, %v1408
          %v1478 = vadd.f32 %v1365, %v1412
          %v1479 = vadd.f32 %v1366, %v1404
          %v1480 = vadd.f32 %v1367, %v1408
          %v1481 = vadd.f32 %v1368, %v1412
          %v1482 = vadd.f32 %v1369, %v1404
          %v1483 = vadd.f32 %v1370, %v1408
          %v1484 = vadd.f32 %v1371, %v1412
          %v1485 = vadd.f32 %v1372, %v1404
          %v1486 = vadd.f32 %v1373, %v1408
          %v1487 = vadd.f32 %v1374, %v1412
          %v1488 = vadd.f32 %v1375, %v1404
          %v1489 = vadd.f32 %v1376, %v1408
          %v1490 = vadd.f32 %v1377, %v1412
          %v1491 = vadd.f32 %v1378, %v1404
          %v1492 = vadd.f32 %v1379, %v1408
          %v1493 = vadd.f32 %v1380, %v1412
          %v1494 = vadd.f32 %v1381, %v1404
          %v1495 = vadd.f32 %v1382, %v1408
          %v1496 = vadd.f32 %v1383, %v1412
          %v1497 = vadd.f32 %v1384, %v1404
          %v1498 = vadd.f32 %v1385, %v1408
          %v1499 = vadd.f32 %v1386, %v1412
          %v1500 = vadd.f32 %v1387, %v1404
          %v1501 = vadd.f32 %v1388, %v1408
          %v1502 = vadd.f32 %v1389, %v1412
          %v1503 = vadd.f32 %v1390, %v1404
          %v1504 = vadd.f32 %v1391, %v1408
          %v1505 = vadd.f32 %v1392, %v1412
          %v1506 = vadd.f32 %v1393, %v1404
          %v1507 = vadd.f32 %v1394, %v1408
          %v1508 = vadd.f32 %v1395, %v1412
          %v1509 = vadd.f32 %v1396, %v1404
          %v1510 = vadd.f32 %v1397, %v1408
          %v1511 = vadd.f32 %v1398, %v1412
          %1512 = vst [vmem:[%s260] sm:$0xff] %v1416
          %1513 = vst [vmem:[%s260 + $0x8] sm:$0xff] %v1417
          %1514 = vst.msk [vmem:[%s260 + $0x10] sm:$0xff] %vm1205, %v1418
          %1515 = vst [vmem:[%s260 + $0x18] sm:$0xff] %v1419
          %1516 = vst [vmem:[%s260 + $0x20] sm:$0xff] %v1420
          %1517 = vst.msk [vmem:[%s260 + $0x28] sm:$0xff] %vm1205, %v1421
          %1518 = vst [vmem:[%s260 + $0x30] sm:$0xff] %v1422
          %1519 = vst [vmem:[%s260 + $0x38] sm:$0xff] %v1423
          %1520 = vst.msk [vmem:[%s260 + $0x40] sm:$0xff] %vm1205, %v1424
          %1521 = vst [vmem:[%s260 + $0x48] sm:$0xff] %v1425
          %1522 = vst [vmem:[%s260 + $0x50] sm:$0xff] %v1426
          %1523 = vst.msk [vmem:[%s260 + $0x58] sm:$0xff] %vm1205, %v1427
          %1524 = vst [vmem:[%s260 + $0x60] sm:$0xff] %v1428
          %1525 = vst [vmem:[%s260 + $0x68] sm:$0xff] %v1429
          %1526 = vst.msk [vmem:[%s260 + $0x70] sm:$0xff] %vm1205, %v1430
          %1527 = vst [vmem:[%s260 + $0x78] sm:$0xff] %v1431
          %1528 = vst [vmem:[%s260 + $0x80] sm:$0xff] %v1432
          %1529 = vst.msk [vmem:[%s260 + $0x88] sm:$0xff] %vm1205, %v1433
          %1530 = vst [vmem:[%s260 + $0x90] sm:$0xff] %v1434
          %1531 = vst [vmem:[%s260 + $0x98] sm:$0xff] %v1435
          %1532 = vst.msk [vmem:[%s260 + $0xa0] sm:$0xff] %vm1205, %v1436
          %1533 = vst [vmem:[%s260 + $0xa8] sm:$0xff] %v1437
          %1534 = vst [vmem:[%s260 + $0xb0] sm:$0xff] %v1438
          %1535 = vst.msk [vmem:[%s260 + $0xb8] sm:$0xff] %vm1205, %v1439
          %1536 = vst [vmem:[%s260 + $0xc0] sm:$0xff] %v1440
          %1537 = vst [vmem:[%s260 + $0xc8] sm:$0xff] %v1441
          %1538 = vst.msk [vmem:[%s260 + $0xd0] sm:$0xff] %vm1205, %v1442
          %1539 = vst [vmem:[%s260 + $0xd8] sm:$0xff] %v1443
          %1540 = vst [vmem:[%s260 + $0xe0] sm:$0xff] %v1444
          %1541 = vst.msk [vmem:[%s260 + $0xe8] sm:$0xff] %vm1205, %v1445
          %1542 = vst [vmem:[%s260 + $0xf0] sm:$0xff] %v1446
          %1543 = vst [vmem:[%s260 + $0xf8] sm:$0xff] %v1447
          %1544 = vst.msk [vmem:[%s260 + $0x100] sm:$0xff] %vm1205, %v1448
          %1545 = vst [vmem:[%s260 + $0x108] sm:$0xff] %v1449
          %1546 = vst [vmem:[%s260 + $0x110] sm:$0xff] %v1450
          %1547 = vst.msk [vmem:[%s260 + $0x118] sm:$0xff] %vm1205, %v1451
          %1548 = vst [vmem:[%s260 + $0x120] sm:$0xff] %v1452
          %1549 = vst [vmem:[%s260 + $0x128] sm:$0xff] %v1453
          %1550 = vst.msk [vmem:[%s260 + $0x130] sm:$0xff] %vm1205, %v1454
          %1551 = vst [vmem:[%s260 + $0x138] sm:$0xff] %v1455
          %1552 = vst [vmem:[%s260 + $0x140] sm:$0xff] %v1456
          %1553 = vst.msk [vmem:[%s260 + $0x148] sm:$0xff] %vm1205, %v1457
          %1554 = vst [vmem:[%s260 + $0x150] sm:$0xff] %v1458
          %1555 = vst [vmem:[%s260 + $0x158] sm:$0xff] %v1459
          %1556 = vst.msk [vmem:[%s260 + $0x160] sm:$0xff] %vm1205, %v1460
          %1557 = vst [vmem:[%s260 + $0x168] sm:$0xff] %v1461
          %1558 = vst [vmem:[%s260 + $0x170] sm:$0xff] %v1462
          %1559 = vst.msk [vmem:[%s260 + $0x178] sm:$0xff] %vm1205, %v1463
          %1560 = vst [vmem:[%s260 + $0x180] sm:$0xff] %v1464
          %1561 = vst [vmem:[%s260 + $0x188] sm:$0xff] %v1465
          %1562 = vst.msk [vmem:[%s260 + $0x190] sm:$0xff] %vm1205, %v1466
          %1563 = vst [vmem:[%s260 + $0x198] sm:$0xff] %v1467
          %1564 = vst [vmem:[%s260 + $0x1a0] sm:$0xff] %v1468
          %1565 = vst.msk [vmem:[%s260 + $0x1a8] sm:$0xff] %vm1205, %v1469
          %1566 = vst [vmem:[%s260 + $0x1b0] sm:$0xff] %v1470
          %1567 = vst [vmem:[%s260 + $0x1b8] sm:$0xff] %v1471
          %1568 = vst.msk [vmem:[%s260 + $0x1c0] sm:$0xff] %vm1205, %v1472
          %1569 = vst [vmem:[%s260 + $0x1c8] sm:$0xff] %v1473
          %1570 = vst [vmem:[%s260 + $0x1d0] sm:$0xff] %v1474
          %1571 = vst.msk [vmem:[%s260 + $0x1d8] sm:$0xff] %vm1205, %v1475
          %1572 = vst [vmem:[%s260 + $0x1e0] sm:$0xff] %v1476
          %1573 = vst [vmem:[%s260 + $0x1e8] sm:$0xff] %v1477
          %1574 = vst.msk [vmem:[%s260 + $0x1f0] sm:$0xff] %vm1205, %v1478
          %1575 = vst [vmem:[%s260 + $0x1f8] sm:$0xff] %v1479
          %1576 = vst [vmem:[%s260 + $0x200] sm:$0xff] %v1480
          %1577 = vst.msk [vmem:[%s260 + $0x208] sm:$0xff] %vm1205, %v1481
          %1578 = vst [vmem:[%s260 + $0x210] sm:$0xff] %v1482
          %1579 = vst [vmem:[%s260 + $0x218] sm:$0xff] %v1483
          %1580 = vst.msk [vmem:[%s260 + $0x220] sm:$0xff] %vm1205, %v1484
          %1581 = vst [vmem:[%s260 + $0x228] sm:$0xff] %v1485
          %1582 = vst [vmem:[%s260 + $0x230] sm:$0xff] %v1486
          %1583 = vst.msk [vmem:[%s260 + $0x238] sm:$0xff] %vm1205, %v1487
          %1584 = vst [vmem:[%s260 + $0x240] sm:$0xff] %v1488
          %1585 = vst [vmem:[%s260 + $0x248] sm:$0xff] %v1489
          %1586 = vst.msk [vmem:[%s260 + $0x250] sm:$0xff] %vm1205, %v1490
          %1587 = vst [vmem:[%s260 + $0x258] sm:$0xff] %v1491
          %1588 = vst [vmem:[%s260 + $0x260] sm:$0xff] %v1492
          %1589 = vst.msk [vmem:[%s260 + $0x268] sm:$0xff] %vm1205, %v1493
          %1590 = vst [vmem:[%s260 + $0x270] sm:$0xff] %v1494
          %1591 = vst [vmem:[%s260 + $0x278] sm:$0xff] %v1495
          %1592 = vst.msk [vmem:[%s260 + $0x280] sm:$0xff] %vm1205, %v1496
          %1593 = vst [vmem:[%s260 + $0x288] sm:$0xff] %v1497
          %1594 = vst [vmem:[%s260 + $0x290] sm:$0xff] %v1498
          %1595 = vst.msk [vmem:[%s260 + $0x298] sm:$0xff] %vm1205, %v1499
          %1596 = vst [vmem:[%s260 + $0x2a0] sm:$0xff] %v1500
          %1597 = vst [vmem:[%s260 + $0x2a8] sm:$0xff] %v1501
          %1598 = vst.msk [vmem:[%s260 + $0x2b0] sm:$0xff] %vm1205, %v1502
          %1599 = vst [vmem:[%s260 + $0x2b8] sm:$0xff] %v1503
          %1600 = vst [vmem:[%s260 + $0x2c0] sm:$0xff] %v1504
          %1601 = vst.msk [vmem:[%s260 + $0x2c8] sm:$0xff] %vm1205, %v1505
          %1602 = vst [vmem:[%s260 + $0x2d0] sm:$0xff] %v1506
          %1603 = vst [vmem:[%s260 + $0x2d8] sm:$0xff] %v1507
          %1604 = vst.msk [vmem:[%s260 + $0x2e0] sm:$0xff] %vm1205, %v1508
          %1605 = vst [vmem:[%s260 + $0x2e8] sm:$0xff] %v1509
          %1606 = vst [vmem:[%s260 + $0x2f0] sm:$0xff] %v1510
          %1607 = vst.msk [vmem:[%s260 + $0x2f8] sm:$0xff] %vm1205, %v1511
        $region52: #{conv2d.1} parent=31 // pred_fallthru
          _
        %s1608 = sand.u32 %s132, 1
        %s1609 = scalar_lea.sflag [#allocation5], %s1608
        %s1610 = sand.u32 %s132, 1
        %s1611 = smul.addr %s1610, 768
        %s1612 = scalar_lea.vmem [#allocation9], %s1611
        // Predicated region
        $region53: #{conv2d.1} parent=31 // pred_check
          %p1613 = pneg %p142
        $region54: #{conv2d.1} parent=31 // pred_check_branch
          %1615 = sbr.rel (%p1613) target = $region56
        $region55: #{conv2d.1} parent=31 // pred_region
          %s1616 = smul.u32 32, %s26
          %s1617 = smul.u32 3, %s27
          %s1619 = ssub.s32 12288, 12288
          %1620 = vsyncadd %s1609, %s1619
          %s1621 = smul.addr %s1616, 3
          %s1622 = sadd.s32 %s1617, %s1621
          %s1623 = smul.addr %s1622, 128
          %s1624 = scalar_lea.hbm %s3, %s1623
          %s1625 = sshll.u32 %s1612, 4
          %s1626 = int_to_ptr.vmem [resolvable:$true] %s1625
          %1631 = dma.vmem_to_hbm [thread:$0]  %s1626, 12288, %s1624, %s1609, 384, 384, 24
        $region56: #{conv2d.1} parent=31 // pred_fallthru
          _
      $region32: #{conv2d.1} parent=5 // pred_fallthru
        _
      %p1632 = scmp.le.s32.totalorder 2, %s16
      // Predicated region
      $region57: #{conv2d.1} parent=5 // pred_check
        %p1633 = pneg %p1632
      $region58: #{conv2d.1} parent=5 // pred_check_branch
        %1635 = sbr.rel (%p1633) target = $region60
      $region59: #{conv2d.1} parent=5 // pred_region
        %s1636 = ssub.s32 %s16, 2
        // Predicated region
        $region61: #{conv2d.1} parent=59 // pred_check
          %p1637 = pneg %p148
        $region62: #{conv2d.1} parent=59 // pred_check_branch
          %1639 = sbr.rel (%p1637) target = $region64
        $region63: #{conv2d.1} parent=59 // pred_region
          %s1640 = sand.u32 %s133, 1
          %s1641 = scalar_lea.sflag [#allocation5], %s1640
          %s1642 = sand.u32 %s133, 1
          %s1643 = smul.addr %s1642, 768
          %s1644 = scalar_lea.vmem [#allocation9], %s1643
          %1645 = dma.done %s1641, 12288
        $region64: #{conv2d.1} parent=59 // pred_fallthru
          _
      $region60: #{conv2d.1} parent=5 // pred_fallthru
        _
    $region6: #{conv2d.1} parent=1 // loop_footer
      %s20 = sadd.s32 1, %s16
    $region7: #{conv2d.1} parent=1 // loop_footer_branch
      %15 = sbr.rel target = $region3
    $region8: #{conv2d.1} parent=1 // loop_exit
      _
    %1646 = vsyncpa [#allocation4], 1
    %s1647 = scalar_lea.sflag [#allocation4], 1
    %1648 = vsyncpa %s1647, 1
    %1649 = vsyncpa [#allocation7], 1
    %1650 = vsyncpa [#allocation5], 1
    %s1651 = scalar_lea.sflag [#allocation5], 1
    %1652 = vsyncpa %s1651, 1

</llo_original>
